<compile_context>
chip_gen: v5e
topology: v5e:2x2
jax: 0.10.0
libtpu: 0.0.40
codegen_flags: <defaults>
</compile_context>

<pallas_src>
import functools

import jax
import jax.numpy as jnp
from jax.experimental import pallas as pl
from jax.experimental.pallas import tpu as pltpu


LANE = 128        # lane width: n_actions is padded up to a multiple of this
NEG_BIG = -1e30   # pad-column bias -> exp underflows to exactly 0 in softmax


def actor_kernel(x_ref, w1_ref, b1_ref, w2_ref, b2_ref, w3_ref, b3_ref, out_ref):
    # Cast the f32 state tile to bf16 here (fused in-kernel, not a separate
    # wrapper-side XLA op).
    x = x_ref[...].astype(jnp.bfloat16)

    # fc1 + ReLU  (MXU matmul, f32 accumulate; bias/ReLU in f32 on the VPU)
    h1 = jnp.dot(x, w1_ref[...], preferred_element_type=jnp.float32) + b1_ref[...]
    h1 = jnp.maximum(h1, 0.0).astype(jnp.bfloat16)

    # fc2 + ReLU
    h2 = jnp.dot(h1, w2_ref[...], preferred_element_type=jnp.float32) + b2_ref[...]
    h2 = jnp.maximum(h2, 0.0).astype(jnp.bfloat16)

    # fc3: logits over lane-padded columns (padded columns carry bias -1e30)
    logits = jnp.dot(h2, w3_ref[...], preferred_element_type=jnp.float32) + b3_ref[...]

    # Numerically-stable softmax; padded columns -> exp(-huge) == 0 exactly.
    m = jnp.max(logits, axis=-1, keepdims=True)
    e = jnp.exp(logits - m)
    inv = pl.reciprocal(jnp.sum(e, axis=-1, keepdims=True), approx=False)
    out_ref[...] = (e * inv).astype(out_ref.dtype)


def _choose_batch_tile(B, block_b):
    """Batch tile: multiple of 256 (fills the v6e/v7x 256-wide MXU), no bigger
    than needed, and >= 2 grid steps when B > 256 so v7x's two TensorCores both
    get work under dimension_semantics=("parallel",)."""
    tb = min(block_b, pl.cdiv(B, 256) * 256)            # don't over-pad tiny batches
    if B > 256:
        tb = min(tb, pl.cdiv(pl.cdiv(B, 2), 256) * 256)  # keep >= 2 grid steps
    return max(tb, 8)


@functools.partial(jax.jit, static_argnames=("n_actions", "block_b"))
def actor_forward(state, params, *, n_actions, block_b=512):
    """state: [B, input_dim] f32 -> action probabilities [B, n_actions] f32."""
    w1, b1, w2, b2, w3p, b3p = params          # head already lane-padded at init
    B, in_dim = state.shape
    fc1, fc2 = w1.shape[1], w2.shape[1]
    n_pad = w3p.shape[1]

    tb = _choose_batch_tile(B, block_b)
    b_pad = pl.cdiv(B, tb) * tb
    x = state                                   # stays f32; cast happens in-kernel
    if b_pad != B:
        x = jnp.pad(x, ((0, b_pad - B), (0, 0)))

    # Weights/biases: full-array block, same block index every grid step, and a
    # single VMEM buffer (their block never changes, so no double-buffering).
    resident = lambda arr: pl.BlockSpec(
        arr.shape, lambda i: (0, 0), pipeline_mode=pl.Buffered(1))

    cost = pl.CostEstimate(
        flops=2 * b_pad * (in_dim * fc1 + fc1 * fc2 + fc2 * n_pad),
        transcendentals=b_pad * n_pad,
        bytes_accessed=(x.size * x.dtype.itemsize
                        + sum(p.size * p.dtype.itemsize for p in params)
                        + b_pad * n_pad * 4),
    )

    probs = pl.pallas_call(
        actor_kernel,
        out_shape=jax.ShapeDtypeStruct((b_pad, n_pad), jnp.float32),
        grid=(b_pad // tb,),
        in_specs=[
            pl.BlockSpec((tb, in_dim), lambda i: (i, 0)),   # pipelined state tile
            resident(w1), resident(b1),
            resident(w2), resident(b2),
            resident(w3p), resident(b3p),
        ],
        out_specs=pl.BlockSpec((tb, n_pad), lambda i: (i, 0)),
        compiler_params=pltpu.CompilerParams(
            # v7x: 2 TensorCores split the batch grid (no effect on v5e/v6e).
            dimension_semantics=("parallel",),
            # VMEM use is ~2-3 MB at tb=512; only set vmem_limit_bytes if
            # block_b is ever pushed past ~4K rows on v5e (16 MiB scoped default).
        ),
        cost_estimate=cost,
    )(x, w1, b1, w2, b2, w3p, b3p)

    # TODO(synk): torch.distributions.Categorical (sampling / log_prob) is a
    # host-side distribution object; a further win would fuse Gumbel-max
    # sampling (pltpu.prng_seed + pltpu.prng_random_bits over the padded
    # logits, padded lanes at -1e30 never win) and emit [B,1] action ids, but
    # the kernel returns probs to match the module's forward semantics.
    return probs[:B, :n_actions]


def init_params(key, input_dim, fc1_dims, fc2_dims, n_actions):
    """PyTorch nn.Linear default init (U(-1/sqrt(fan_in), +bound)).

    Weights stored [in, out] in bf16 (native MXU dtype, halves weight DMA);
    biases kept f32. The softmax head is lane-padded to a multiple of 128 HERE,
    once, so actor_forward has no per-call pad ops:
      * padded weight columns are 0
      * padded bias entries are -1e30 -> softmax probability exactly 0.
    """
    ks = jax.random.split(key, 6)

    def lin(kw, kb, fan_in, fan_out):
        bound = 1.0 / jnp.sqrt(jnp.float32(fan_in))
        w = jax.random.uniform(kw, (fan_in, fan_out), jnp.float32, -bound, bound)
        b = jax.random.uniform(kb, (1, fan_out), jnp.float32, -bound, bound)
        return w.astype(jnp.bfloat16), b

    w1, b1 = lin(ks[0], ks[1], input_dim, fc1_dims)
    w2, b2 = lin(ks[2], ks[3], fc1_dims, fc2_dims)
    w3, b3 = lin(ks[4], ks[5], fc2_dims, n_actions)

    n_pad = pl.cdiv(n_actions, LANE) * LANE
    w3p = jnp.pad(w3, ((0, 0), (0, n_pad - n_actions)))
    b3p = jnp.pad(b3, ((0, 0), (0, n_pad - n_actions)), constant_values=NEG_BIG)
    return (w1, b1, w2, b2, w3p, b3p)


def actor_forward_ref(state, params, n_actions):
    """Pure-JAX reference using the same padded params / bf16-matmul recipe."""
    w1, b1, w2, b2, w3p, b3p = params
    x = state.astype(jnp.bfloat16)
    h1 = jnp.maximum(jnp.dot(x, w1, preferred_element_type=jnp.float32) + b1, 0.0)
    h2 = jnp.maximum(
        jnp.dot(h1.astype(jnp.bfloat16), w2, preferred_element_type=jnp.float32) + b2, 0.0)
    logits = jnp.dot(h2.astype(jnp.bfloat16), w3p, preferred_element_type=jnp.float32) + b3p
    return jax.nn.softmax(logits, axis=-1)[:, :n_actions]


if __name__ == "__main__":
    # Shapes consistent with the module: observation dim 8, 4 actions,
    # module-default hidden dims (256, 256). Batch of 512 rollout states so the
    # batch grid runs 2 pipelined / core-parallel steps of 256 rows each.
    B, INPUT_DIM, FC1, FC2, N_ACTIONS = 512, 8, 256, 256, 4

    key = jax.random.PRNGKey(0)
    k_params, k_x = jax.random.split(key)

    params = init_params(k_params, INPUT_DIM, FC1, FC2, N_ACTIONS)
    state = jax.random.normal(k_x, (B, INPUT_DIM), jnp.float32)

    probs = actor_forward(state, params, n_actions=N_ACTIONS)
    probs = jax.block_until_ready(probs)

    # sanity check against pure-JAX reference
    ref = actor_forward_ref(state, params, N_ACTIONS)
    assert probs.shape == (B, N_ACTIONS)
    assert jnp.allclose(probs, ref, atol=1e-2, rtol=1e-2), \
        float(jnp.max(jnp.abs(probs - ref)))
    assert jnp.allclose(jnp.sum(probs, axis=-1), 1.0, atol=1e-3)

    print("KERNEL_OK")
</pallas_src>

<mosaic_0001>
module attributes {stable_mosaic.version = 11 : i64} {
  func.func @actor_kernel(%arg0: i32, %arg1: memref<256x8xf32, #tpu.memory_space<vmem>>, %arg2: memref<8x256xbf16, #tpu.memory_space<vmem>>, %arg3: memref<1x256xf32, #tpu.memory_space<vmem>>, %arg4: memref<256x256xbf16, #tpu.memory_space<vmem>>, %arg5: memref<1x256xf32, #tpu.memory_space<vmem>>, %arg6: memref<256x128xbf16, #tpu.memory_space<vmem>>, %arg7: memref<1x128xf32, #tpu.memory_space<vmem>>, %arg8: memref<256x128xf32, #tpu.memory_space<vmem>>) attributes {dimension_semantics = [#tpu.dimension_semantics<parallel>], iteration_bounds = array<i64: 2>, scalar_prefetch = 0 : i64, scratch_operands = 0 : i64, tpu.core_type = #tpu.core_type<tc>, window_params = [{transform_indices = @transform_0, window_bounds = array<i64: 256, 8>}, {pipeline_mode = #tpu.pipeline_mode<synchronous>, transform_indices = @transform_1, window_bounds = array<i64: 8, 256>}, {pipeline_mode = #tpu.pipeline_mode<synchronous>, transform_indices = @transform_2, window_bounds = array<i64: 1, 256>}, {pipeline_mode = #tpu.pipeline_mode<synchronous>, transform_indices = @transform_3, window_bounds = array<i64: 256, 256>}, {pipeline_mode = #tpu.pipeline_mode<synchronous>, transform_indices = @transform_4, window_bounds = array<i64: 1, 256>}, {pipeline_mode = #tpu.pipeline_mode<synchronous>, transform_indices = @transform_5, window_bounds = array<i64: 256, 128>}, {pipeline_mode = #tpu.pipeline_mode<synchronous>, transform_indices = @transform_6, window_bounds = array<i64: 1, 128>}, {transform_indices = @transform_7, window_bounds = array<i64: 256, 128>}]} {
    %c0 = arith.constant 0 : index
    %c0_0 = arith.constant 0 : index
    %0 = vector.load %arg1[%c0, %c0_0] : memref<256x8xf32, #tpu.memory_space<vmem>>, vector<256x8xf32>
    %1 = arith.truncf %0 : vector<256x8xf32> to vector<256x8xbf16>
    %c0_1 = arith.constant 0 : index
    %c0_2 = arith.constant 0 : index
    %2 = vector.load %arg2[%c0_1, %c0_2] : memref<8x256xbf16, #tpu.memory_space<vmem>>, vector<8x256xbf16>
    %cst = arith.constant dense<0.000000e+00> : vector<256x256xf32>
    %3 = tpu.matmul %1, %2, %cst {dimension_numbers = #tpu.dot_dimension_numbers<[1], [0], [0], [1], [0, 0, 1, 1], [], []>} : vector<256x8xbf16>, vector<8x256xbf16>, vector<256x256xf32> -> vector<256x256xf32>
    %c0_3 = arith.constant 0 : index
    %c0_4 = arith.constant 0 : index
    %4 = vector.load %arg3[%c0_3, %c0_4] : memref<1x256xf32, #tpu.memory_space<vmem>>, vector<1x256xf32>
    %5 = vector.broadcast %4 : vector<1x256xf32> to vector<256x256xf32>
    %6 = arith.addf %3, %5 : vector<256x256xf32>
    %cst_5 = arith.constant 0.000000e+00 : f32
    %7 = vector.broadcast %cst_5 : f32 to vector<256x256xf32>
    %8 = arith.maximumf %6, %7 : vector<256x256xf32>
    %9 = arith.truncf %8 : vector<256x256xf32> to vector<256x256xbf16>
    %c0_6 = arith.constant 0 : index
    %c0_7 = arith.constant 0 : index
    %10 = vector.load %arg4[%c0_6, %c0_7] : memref<256x256xbf16, #tpu.memory_space<vmem>>, vector<256x256xbf16>
    %cst_8 = arith.constant dense<0.000000e+00> : vector<256x256xf32>
    %11 = tpu.matmul %9, %10, %cst_8 {dimension_numbers = #tpu.dot_dimension_numbers<[1], [0], [0], [1], [0, 0, 1, 1], [], []>} : vector<256x256xbf16>, vector<256x256xbf16>, vector<256x256xf32> -> vector<256x256xf32>
    %c0_9 = arith.constant 0 : index
    %c0_10 = arith.constant 0 : index
    %12 = vector.load %arg5[%c0_9, %c0_10] : memref<1x256xf32, #tpu.memory_space<vmem>>, vector<1x256xf32>
    %13 = vector.broadcast %12 : vector<1x256xf32> to vector<256x256xf32>
    %14 = arith.addf %11, %13 : vector<256x256xf32>
    %cst_11 = arith.constant 0.000000e+00 : f32
    %15 = vector.broadcast %cst_11 : f32 to vector<256x256xf32>
    %16 = arith.maximumf %14, %15 : vector<256x256xf32>
    %17 = arith.truncf %16 : vector<256x256xf32> to vector<256x256xbf16>
    %c0_12 = arith.constant 0 : index
    %c0_13 = arith.constant 0 : index
    %18 = vector.load %arg6[%c0_12, %c0_13] : memref<256x128xbf16, #tpu.memory_space<vmem>>, vector<256x128xbf16>
    %cst_14 = arith.constant dense<0.000000e+00> : vector<256x128xf32>
    %19 = tpu.matmul %17, %18, %cst_14 {dimension_numbers = #tpu.dot_dimension_numbers<[1], [0], [0], [1], [0, 0, 1, 1], [], []>} : vector<256x256xbf16>, vector<256x128xbf16>, vector<256x128xf32> -> vector<256x128xf32>
    %c0_15 = arith.constant 0 : index
    %c0_16 = arith.constant 0 : index
    %20 = vector.load %arg7[%c0_15, %c0_16] : memref<1x128xf32, #tpu.memory_space<vmem>>, vector<1x128xf32>
    %21 = vector.broadcast %20 : vector<1x128xf32> to vector<256x128xf32>
    %22 = arith.addf %19, %21 : vector<256x128xf32>
    %cst_17 = arith.constant dense<0xFF800000> : vector<256xf32>
    %23 = vector.multi_reduction <maximumf>, %22, %cst_17 [1] : vector<256x128xf32> to vector<256xf32>
    %24 = vector.shape_cast %23 : vector<256xf32> to vector<256x1xf32>
    %25 = vector.broadcast %24 : vector<256x1xf32> to vector<256x128xf32>
    %26 = arith.subf %22, %25 : vector<256x128xf32>
    %27 = math.exp %26 : vector<256x128xf32>
    %cst_18 = arith.constant dense<0.000000e+00> : vector<256xf32>
    %28 = vector.multi_reduction <add>, %27, %cst_18 [1] : vector<256x128xf32> to vector<256xf32>
    %29 = vector.shape_cast %28 : vector<256xf32> to vector<256x1xf32>
    %30 = tpu.reciprocal %29 : vector<256x1xf32> -> vector<256x1xf32>
    %31 = vector.broadcast %30 : vector<256x1xf32> to vector<256x128xf32>
    %32 = arith.mulf %27, %31 : vector<256x128xf32>
    %c0_19 = arith.constant 0 : index
    %c0_20 = arith.constant 0 : index
    %33 = vector.load %arg8[%c0_19, %c0_20] : memref<256x128xf32, #tpu.memory_space<vmem>>, vector<256x128xf32>
    tpu.vector_store %arg8[%c0_19, %c0_20], %32 {strides = array<i32>} : memref<256x128xf32, #tpu.memory_space<vmem>>, vector<256x128xf32>,
    return
  }
  func.func @transform_0(%arg0: i32) -> (i32, i32) {
    %c0_i32 = arith.constant 0 : i32
    %c0_i32_0 = arith.constant 0 : i32
    return %arg0, %c0_i32 : i32, i32
  }
  func.func @transform_1(%arg0: i32) -> (i32, i32) {
    %c0_i32 = arith.constant 0 : i32
    %c0_i32_0 = arith.constant 0 : i32
    %c0_i32_1 = arith.constant 0 : i32
    return %c0_i32, %c0_i32_0 : i32, i32
  }
  func.func @transform_2(%arg0: i32) -> (i32, i32) {
    %c0_i32 = arith.constant 0 : i32
    %c0_i32_0 = arith.constant 0 : i32
    %c0_i32_1 = arith.constant 0 : i32
    return %c0_i32, %c0_i32_0 : i32, i32
  }
  func.func @transform_3(%arg0: i32) -> (i32, i32) {
    %c0_i32 = arith.constant 0 : i32
    %c0_i32_0 = arith.constant 0 : i32
    %c0_i32_1 = arith.constant 0 : i32
    return %c0_i32, %c0_i32_0 : i32, i32
  }
  func.func @transform_4(%arg0: i32) -> (i32, i32) {
    %c0_i32 = arith.constant 0 : i32
    %c0_i32_0 = arith.constant 0 : i32
    %c0_i32_1 = arith.constant 0 : i32
    return %c0_i32, %c0_i32_0 : i32, i32
  }
  func.func @transform_5(%arg0: i32) -> (i32, i32) {
    %c0_i32 = arith.constant 0 : i32
    %c0_i32_0 = arith.constant 0 : i32
    %c0_i32_1 = arith.constant 0 : i32
    return %c0_i32, %c0_i32_0 : i32, i32
  }
  func.func @transform_6(%arg0: i32) -> (i32, i32) {
    %c0_i32 = arith.constant 0 : i32
    %c0_i32_0 = arith.constant 0 : i32
    %c0_i32_1 = arith.constant 0 : i32
    return %c0_i32, %c0_i32_0 : i32, i32
  }
  func.func @transform_7(%arg0: i32) -> (i32, i32) {
    %c0_i32 = arith.constant 0 : i32
    %c0_i32_0 = arith.constant 0 : i32
    return %arg0, %c0_i32 : i32, i32
  }
}

</mosaic_0001>

<llo_original>
// kernel: actor_forward.1
$region0: #{actor_forward.1}
  #allocation0 [shape = 'u32[]', space=smem, size = 0x4, offset = 0x4, fixed_abs, tag = 'smem constant byte address 0x4 - core index']
  #allocation1 [shape = 'u32[72,128]{1,0:T(1,128)}', space=vmem, size = 0x9000, scoped, tag = 'internal scratch']
  %s0 = inlined_call_operand.vmem [shape: f32[512,8], index: 0, kind: input, shape index: {}]
  %s1 = inlined_call_operand.vmem [shape: bf16[8,256], index: 1, kind: input, shape index: {}]
  %s2 = inlined_call_operand.vmem [shape: f32[1,256], index: 2, kind: input, shape index: {}]
  %s3 = inlined_call_operand.vmem [shape: bf16[256,256], index: 3, kind: input, shape index: {}]
  %s4 = inlined_call_operand.vmem [shape: f32[1,256], index: 4, kind: input, shape index: {}]
  %s5 = inlined_call_operand.vmem [shape: bf16[256,128], index: 5, kind: input, shape index: {}]
  %s6 = inlined_call_operand.vmem [shape: f32[1,128], index: 6, kind: input, shape index: {}]
  %s7 = inlined_call_operand.vmem [shape: f32[512,128], index: 7, kind: output, shape index: {}]
  %s8 = sld [smem:[#allocation0]]
  $region61: #{actor_forward.1} parent=0
    _
  %s10 = ssub.s32 1, %s8
  %s11 = scalar_select 0, %s10, %s8
  loop: start=0, step=1, limit=4
  $region2: #{actor_forward.1} parent=0 // loop_pre_header
    _
  $region3: #{actor_forward.1} parent=0 // loop_header
    %s13 = sphi 0, %s17
    %p14 = scmp.ge.s32.totalorder %s13, 4
    %s23 = sphi 0, %s25
    %s26 = sphi 0, %s23
    %s27 = sphi 0, %s26
    %s43 = sphi 0, %s27
    %s47 = sphi 0, %s47
    %s49 = sphi 0, %s47
    %s50 = sphi 0, %s49
    %s64 = sphi 0, %s50
    %s68 = sphi 0, %s68
    %s70 = sphi 0, %s68
    %s71 = sphi 0, %s70
    %s85 = sphi 0, %s71
    %s89 = sphi 0, %s89
    %s91 = sphi 0, %s89
    %s92 = sphi 0, %s91
    %s106 = sphi 0, %s92
    %s110 = sphi 0, %s110
    %s112 = sphi 0, %s110
    %s113 = sphi 0, %s112
    %s127 = sphi 0, %s113
    %s131 = sphi 0, %s131
    %s133 = sphi 0, %s131
    %s134 = sphi 0, %s133
    %s148 = sphi 0, %s134
    %s152 = sphi 0, %s152
    %s154 = sphi 0, %s152
    %s155 = sphi 0, %s154
    %s169 = sphi 0, %s155
    %s175 = sphi 0, %s177
    %s178 = sphi 0, %s175
    %s179 = sphi 0, %s178
    %s195 = sphi 0, %s179
  $region4: #{actor_forward.1} parent=0 // loop_header_branch
    %16 = sbr.rel (%p14) target = $region8
  $region5: #{actor_forward.1} parent=0 // loop_body
    %s18 = ssub.s32 %s13, 1
    %s19 = ssub.s32 %s13, 2
    %s20 = sadd.s32 %s13, 1
    %s21 = ssub.s32 %s13, %s20
    %p22 = scmp.eq.s32.totalorder %s21, 0
    %s24 = sadd.s32 %s23, 1
    %s25 = scalar_select %p22, %s23, %s24
    %p28 = pneg %p22
    %p29 = scmp.eq.s32.totalorder %s13, 1
    %p30 = por %p28, %p29
    %p31 = scmp.ne.s32.totalorder %s23, %s26
    %p32 = scmp.eq.s32.totalorder %s13, 0
    %p33 = por %p31, %p32
    %p34 = scmp.ne.s32.totalorder %s23, %s26
    %p35 = scmp.eq.s32.totalorder %s18, 1
    %p36 = por %p34, %p35
    %p37 = scmp.ne.s32.totalorder %s26, %s27
    %p38 = scmp.eq.s32.totalorder %s18, 0
    %p39 = por %p37, %p38
    %p40 = scmp.ne.s32.totalorder %s26, %s27
    %p41 = scmp.eq.s32.totalorder %s19, 1
    %p42 = por %p40, %p41
    %p44 = scmp.ne.s32.totalorder %s27, %s43
    %p45 = scmp.eq.s32.totalorder %s19, 0
    %p46 = por %p44, %p45
    %s48 = sadd.s32 %s47, 1
    %p51 = scmp.eq.s32.totalorder %s13, 1
    %p52 = scmp.ne.s32.totalorder %s47, %s49
    %p53 = scmp.eq.s32.totalorder %s13, 0
    %p54 = por %p52, %p53
    %p55 = scmp.ne.s32.totalorder %s47, %s49
    %p56 = scmp.eq.s32.totalorder %s18, 1
    %p57 = por %p55, %p56
    %p58 = scmp.ne.s32.totalorder %s49, %s50
    %p59 = scmp.eq.s32.totalorder %s18, 0
    %p60 = por %p58, %p59
    %p61 = scmp.ne.s32.totalorder %s49, %s50
    %p62 = scmp.eq.s32.totalorder %s19, 1
    %p63 = por %p61, %p62
    %p65 = scmp.ne.s32.totalorder %s50, %s64
    %p66 = scmp.eq.s32.totalorder %s19, 0
    %p67 = por %p65, %p66
    %s69 = sadd.s32 %s68, 1
    %p72 = scmp.eq.s32.totalorder %s13, 1
    %p73 = scmp.ne.s32.totalorder %s68, %s70
    %p74 = scmp.eq.s32.totalorder %s13, 0
    %p75 = por %p73, %p74
    %p76 = scmp.ne.s32.totalorder %s68, %s70
    %p77 = scmp.eq.s32.totalorder %s18, 1
    %p78 = por %p76, %p77
    %p79 = scmp.ne.s32.totalorder %s70, %s71
    %p80 = scmp.eq.s32.totalorder %s18, 0
    %p81 = por %p79, %p80
    %p82 = scmp.ne.s32.totalorder %s70, %s71
    %p83 = scmp.eq.s32.totalorder %s19, 1
    %p84 = por %p82, %p83
    %p86 = scmp.ne.s32.totalorder %s71, %s85
    %p87 = scmp.eq.s32.totalorder %s19, 0
    %p88 = por %p86, %p87
    %s90 = sadd.s32 %s89, 1
    %p93 = scmp.eq.s32.totalorder %s13, 1
    %p94 = scmp.ne.s32.totalorder %s89, %s91
    %p95 = scmp.eq.s32.totalorder %s13, 0
    %p96 = por %p94, %p95
    %p97 = scmp.ne.s32.totalorder %s89, %s91
    %p98 = scmp.eq.s32.totalorder %s18, 1
    %p99 = por %p97, %p98
    %p100 = scmp.ne.s32.totalorder %s91, %s92
    %p101 = scmp.eq.s32.totalorder %s18, 0
    %p102 = por %p100, %p101
    %p103 = scmp.ne.s32.totalorder %s91, %s92
    %p104 = scmp.eq.s32.totalorder %s19, 1
    %p105 = por %p103, %p104
    %p107 = scmp.ne.s32.totalorder %s92, %s106
    %p108 = scmp.eq.s32.totalorder %s19, 0
    %p109 = por %p107, %p108
    %s111 = sadd.s32 %s110, 1
    %p114 = scmp.eq.s32.totalorder %s13, 1
    %p115 = scmp.ne.s32.totalorder %s110, %s112
    %p116 = scmp.eq.s32.totalorder %s13, 0
    %p117 = por %p115, %p116
    %p118 = scmp.ne.s32.totalorder %s110, %s112
    %p119 = scmp.eq.s32.totalorder %s18, 1
    %p120 = por %p118, %p119
    %p121 = scmp.ne.s32.totalorder %s112, %s113
    %p122 = scmp.eq.s32.totalorder %s18, 0
    %p123 = por %p121, %p122
    %p124 = scmp.ne.s32.totalorder %s112, %s113
    %p125 = scmp.eq.s32.totalorder %s19, 1
    %p126 = por %p124, %p125
    %p128 = scmp.ne.s32.totalorder %s113, %s127
    %p129 = scmp.eq.s32.totalorder %s19, 0
    %p130 = por %p128, %p129
    %s132 = sadd.s32 %s131, 1
    %p135 = scmp.eq.s32.totalorder %s13, 1
    %p136 = scmp.ne.s32.totalorder %s131, %s133
    %p137 = scmp.eq.s32.totalorder %s13, 0
    %p138 = por %p136, %p137
    %p139 = scmp.ne.s32.totalorder %s131, %s133
    %p140 = scmp.eq.s32.totalorder %s18, 1
    %p141 = por %p139, %p140
    %p142 = scmp.ne.s32.totalorder %s133, %s134
    %p143 = scmp.eq.s32.totalorder %s18, 0
    %p144 = por %p142, %p143
    %p145 = scmp.ne.s32.totalorder %s133, %s134
    %p146 = scmp.eq.s32.totalorder %s19, 1
    %p147 = por %p145, %p146
    %p149 = scmp.ne.s32.totalorder %s134, %s148
    %p150 = scmp.eq.s32.totalorder %s19, 0
    %p151 = por %p149, %p150
    %s153 = sadd.s32 %s152, 1
    %p156 = scmp.eq.s32.totalorder %s13, 1
    %p157 = scmp.ne.s32.totalorder %s152, %s154
    %p158 = scmp.eq.s32.totalorder %s13, 0
    %p159 = por %p157, %p158
    %p160 = scmp.ne.s32.totalorder %s152, %s154
    %p161 = scmp.eq.s32.totalorder %s18, 1
    %p162 = por %p160, %p161
    %p163 = scmp.ne.s32.totalorder %s154, %s155
    %p164 = scmp.eq.s32.totalorder %s18, 0
    %p165 = por %p163, %p164
    %p166 = scmp.ne.s32.totalorder %s154, %s155
    %p167 = scmp.eq.s32.totalorder %s19, 1
    %p168 = por %p166, %p167
    %p170 = scmp.ne.s32.totalorder %s155, %s169
    %p171 = scmp.eq.s32.totalorder %s19, 0
    %p172 = por %p170, %p171
    %s173 = ssub.s32 %s13, %s20
    %p174 = scmp.eq.s32.totalorder %s173, 0
    %s176 = sadd.s32 %s175, 1
    %s177 = scalar_select %p174, %s175, %s176
    %p180 = pneg %p174
    %p181 = scmp.eq.s32.totalorder %s13, 1
    %p182 = por %p180, %p181
    %p183 = scmp.ne.s32.totalorder %s175, %s178
    %p184 = scmp.eq.s32.totalorder %s13, 0
    %p185 = por %p183, %p184
    %p186 = scmp.ne.s32.totalorder %s175, %s178
    %p187 = scmp.eq.s32.totalorder %s18, 1
    %p188 = por %p186, %p187
    %p189 = scmp.ne.s32.totalorder %s178, %s179
    %p190 = scmp.eq.s32.totalorder %s18, 0
    %p191 = por %p189, %p190
    %p192 = scmp.ne.s32.totalorder %s178, %s179
    %p193 = scmp.eq.s32.totalorder %s19, 1
    %p194 = por %p192, %p193
    %p196 = scmp.ne.s32.totalorder %s179, %s195
    %p197 = scmp.eq.s32.totalorder %s19, 0
    %p198 = por %p196, %p197
    %p199 = scmp.le.s32.totalorder 1, %s13
    %p200 = scmp.lt.s32.totalorder %s13, 3
    %p201 = pnand %p199, %p200
    %p202 = pneg %p201
    // Predicated region
    $region9: #{actor_forward.1} parent=5 // pred_check
      _
    $region10: #{actor_forward.1} parent=5 // pred_check_branch
      %204 = sbr.rel (%p201) target = $region12
    $region11: #{actor_forward.1} parent=5 // pred_region
      %s205 = ssub.s32 %s13, 1
      // Predicated region
      $region13: #{actor_forward.1} parent=11 // pred_check
        %p206 = pneg %p60
      $region14: #{actor_forward.1} parent=11 // pred_check_branch
        %208 = sbr.rel (%p206) target = $region16
      $region15: #{actor_forward.1} parent=11 // pred_region
        _
      $region16: #{actor_forward.1} parent=11 // pred_fallthru
        _
      // Predicated region
      $region17: #{actor_forward.1} parent=11 // pred_check
        %p209 = pneg %p81
      $region18: #{actor_forward.1} parent=11 // pred_check_branch
        %211 = sbr.rel (%p209) target = $region20
      $region19: #{actor_forward.1} parent=11 // pred_region
        _
      $region20: #{actor_forward.1} parent=11 // pred_fallthru
        _
      // Predicated region
      $region21: #{actor_forward.1} parent=11 // pred_check
        %p212 = pneg %p102
      $region22: #{actor_forward.1} parent=11 // pred_check_branch
        %214 = sbr.rel (%p212) target = $region24
      $region23: #{actor_forward.1} parent=11 // pred_region
        _
      $region24: #{actor_forward.1} parent=11 // pred_fallthru
        _
      // Predicated region
      $region25: #{actor_forward.1} parent=11 // pred_check
        %p215 = pneg %p123
      $region26: #{actor_forward.1} parent=11 // pred_check_branch
        %217 = sbr.rel (%p215) target = $region28
      $region27: #{actor_forward.1} parent=11 // pred_region
        _
      $region28: #{actor_forward.1} parent=11 // pred_fallthru
        _
      // Predicated region
      $region29: #{actor_forward.1} parent=11 // pred_check
        %p218 = pneg %p144
      $region30: #{actor_forward.1} parent=11 // pred_check_branch
        %220 = sbr.rel (%p218) target = $region32
      $region31: #{actor_forward.1} parent=11 // pred_region
        _
      $region32: #{actor_forward.1} parent=11 // pred_fallthru
        _
      // Predicated region
      $region33: #{actor_forward.1} parent=11 // pred_check
        %p221 = pneg %p165
      $region34: #{actor_forward.1} parent=11 // pred_check_branch
        %223 = sbr.rel (%p221) target = $region36
      $region35: #{actor_forward.1} parent=11 // pred_region
        _
      $region36: #{actor_forward.1} parent=11 // pred_fallthru
        _
    $region12: #{actor_forward.1} parent=5 // pred_fallthru
      _
    %p224 = scmp.lt.s32.totalorder %s13, 2
    // Predicated region
    $region37: #{actor_forward.1} parent=5 // pred_check
      %p225 = pneg %p224
    $region38: #{actor_forward.1} parent=5 // pred_check_branch
      %227 = sbr.rel (%p225) target = $region40
    $region39: #{actor_forward.1} parent=5 // pred_region
      // Predicated region
      $region41: #{actor_forward.1} parent=39 // pred_check
        %p228 = pneg %p33
      $region42: #{actor_forward.1} parent=39 // pred_check_branch
        %230 = sbr.rel (%p228) target = $region44
      $region43: #{actor_forward.1} parent=39 // pred_region
        %s231 = smul.u32 32, %s13
        %p232 = scmp.lt.s32.totalorder %s231, 63
        %s233 = scalar_select %p232, %s231, 63
        %s234 = smul.addr %s233, 8
        %s235 = scalar_lea.vmem %s0, %s234
        %s236 = smul.u32 32, %s13
      $region44: #{actor_forward.1} parent=39 // pred_fallthru
        _
    $region40: #{actor_forward.1} parent=5 // pred_fallthru
      _
    %p237 = scmp.le.s32.totalorder 1, %s13
    %p238 = scmp.lt.s32.totalorder %s13, 3
    %p239 = pnand %p237, %p238
    %p240 = pneg %p239
    // Predicated region
    $region45: #{actor_forward.1} parent=5 // pred_check
      _
    $region46: #{actor_forward.1} parent=5 // pred_check_branch
      %242 = sbr.rel (%p239) target = $region48
    $region47: #{actor_forward.1} parent=5 // pred_region
      %s243 = ssub.s32 %s13, 1
      %s244 = smul.u32 32, %s18
      %p245 = scmp.lt.s32.totalorder %s244, 63
      %s246 = scalar_select %p245, %s244, 63
      %s247 = smul.addr %s246, 8
      %s248 = scalar_lea.vmem %s0, %s247
      %p249 = pneg %p39
      %p250 = pneg %p36
      %p251 = pneg %p60
      %p252 = pneg %p57
      %p253 = pneg %p81
      %p254 = pneg %p78
      %p255 = pneg %p102
      %p256 = pneg %p99
      %p257 = pneg %p123
      %p258 = pneg %p120
      %p259 = pneg %p144
      %p260 = pneg %p141
      %p261 = pneg %p165
      %p262 = pneg %p162
      %p263 = pneg %p191
      %p264 = pneg %p188
      %s265 = smul.u32 32, %s18
      %p266 = scmp.lt.s32.totalorder %s265, 63
      %s267 = scalar_select %p266, %s265, 63
      %s268 = smul.addr %s267, 8
      %s269 = scalar_lea.vmem %s7, %s268
      %s270 = smul.u32 32, %s18
      %p271 = scmp.lt.s32.totalorder %s270, 63
      %s272 = scalar_select %p271, %s270, 63
      %s273 = smul.addr %s272, 8
      %s274 = scalar_lea.vmem %s0, %s273
      %s275 = smul.u32 32, %s18
      %s276 = smul.u32 32, %s18
      %p277 = scmp.lt.s32.totalorder %s276, 63
      %s278 = scalar_select %p277, %s276, 63
      %s279 = smul.addr %s278, 8
      %s280 = scalar_lea.vmem %s7, %s279
      %s281 = smul.u32 32, %s18
      %v283 = vld [vmem:[%s274] sm:$0xff]
      %v284 = vld [vmem:[%s274 + $0x8] sm:$0xff]
      %v285 = vld [vmem:[%s274 + $0x10] sm:$0xff]
      %v286 = vld [vmem:[%s274 + $0x18] sm:$0xff]
      %v287 = vld [vmem:[%s274 + $0x20] sm:$0xff]
      %v288 = vld [vmem:[%s274 + $0x28] sm:$0xff]
      %v289 = vld [vmem:[%s274 + $0x30] sm:$0xff]
      %v290 = vld [vmem:[%s274 + $0x38] sm:$0xff]
      %v291 = vld [vmem:[%s274 + $0x40] sm:$0xff]
      %v292 = vld [vmem:[%s274 + $0x48] sm:$0xff]
      %v293 = vld [vmem:[%s274 + $0x50] sm:$0xff]
      %v294 = vld [vmem:[%s274 + $0x58] sm:$0xff]
      %v295 = vld [vmem:[%s274 + $0x60] sm:$0xff]
      %v296 = vld [vmem:[%s274 + $0x68] sm:$0xff]
      %v297 = vld [vmem:[%s274 + $0x70] sm:$0xff]
      %v298 = vld [vmem:[%s274 + $0x78] sm:$0xff]
      %v299 = vld [vmem:[%s274 + $0x80] sm:$0xff]
      %v300 = vld [vmem:[%s274 + $0x88] sm:$0xff]
      %v301 = vld [vmem:[%s274 + $0x90] sm:$0xff]
      %v302 = vld [vmem:[%s274 + $0x98] sm:$0xff]
      %v303 = vld [vmem:[%s274 + $0xa0] sm:$0xff]
      %v304 = vld [vmem:[%s274 + $0xa8] sm:$0xff]
      %v305 = vld [vmem:[%s274 + $0xb0] sm:$0xff]
      %v306 = vld [vmem:[%s274 + $0xb8] sm:$0xff]
      %v307 = vld [vmem:[%s274 + $0xc0] sm:$0xff]
      %v308 = vld [vmem:[%s274 + $0xc8] sm:$0xff]
      %v309 = vld [vmem:[%s274 + $0xd0] sm:$0xff]
      %v310 = vld [vmem:[%s274 + $0xd8] sm:$0xff]
      %v311 = vld [vmem:[%s274 + $0xe0] sm:$0xff]
      %v312 = vld [vmem:[%s274 + $0xe8] sm:$0xff]
      %v313 = vld [vmem:[%s274 + $0xf0] sm:$0xff]
      %v314 = vld [vmem:[%s274 + $0xf8] sm:$0xff]
      %v315 = vpack.c.bf16 %v284, %v283
      %v316 = vpack.c.bf16 %v286, %v285
      %v317 = vpack.c.bf16 %v288, %v287
      %v318 = vpack.c.bf16 %v290, %v289
      %v319 = vpack.c.bf16 %v292, %v291
      %v320 = vpack.c.bf16 %v294, %v293
      %v321 = vpack.c.bf16 %v296, %v295
      %v322 = vpack.c.bf16 %v298, %v297
      %v323 = vpack.c.bf16 %v300, %v299
      %v324 = vpack.c.bf16 %v302, %v301
      %v325 = vpack.c.bf16 %v304, %v303
      %v326 = vpack.c.bf16 %v306, %v305
      %v327 = vpack.c.bf16 %v308, %v307
      %v328 = vpack.c.bf16 %v310, %v309
      %v329 = vpack.c.bf16 %v312, %v311
      %v330 = vpack.c.bf16 %v314, %v313
      %v331 = vld [vmem:[%s1] sm:$0xff]
      %v332 = vld [vmem:[%s2] sm:$0x3]
      %v334 = vperm.slane %v332, 0
      %v335 = vperm.slane %v332, 1
      %v339 = vunpack.c.l.b16 %v331
      %v340 = vunpack.c.h.b16 %v331
      %v341 = vpack.c.b16 %v339, %v339
      %v342 = vpack.c.b16 %v340, %v340
      %vm343 = vcmask 64512
      %v345 = vsel %vm343, %v315, 0
      %v348 = vsel %vm343, %v316, 0
      %v351 = vsel %vm343, %v317, 0
      %v354 = vsel %vm343, %v318, 0
      %v357 = vsel %vm343, %v319, 0
      %v360 = vsel %vm343, %v320, 0
      %v363 = vsel %vm343, %v321, 0
      %v366 = vsel %vm343, %v322, 0
      %v369 = vsel %vm343, %v323, 0
      %v372 = vsel %vm343, %v324, 0
      %v375 = vsel %vm343, %v325, 0
      %v378 = vsel %vm343, %v326, 0
      %v381 = vsel %vm343, %v327, 0
      %v384 = vsel %vm343, %v328, 0
      %v387 = vsel %vm343, %v329, 0
      %v390 = vsel %vm343, %v330, 0
      %vm392 = vcmask 1043456
      %v394 = vsel %vm392, %v341, 0
      %v397 = vsel %vm392, %v342, 0
      %399 = vmatpush.bf16.msra.mxu0 0
      %400 = vmatpush.bf16.msra.mxu0 0
      %401 = vmatpush.bf16.msra.mxu0 0
      %402 = vmatpush.bf16.msra.mxu0 0
      %403 = vmatpush.bf16.msra.mxu0 0
      %404 = vmatpush.bf16.msra.mxu0 0
      %405 = vmatpush.bf16.msra.mxu0 0
      %406 = vmatpush.bf16.msra.mxu0 %v394
      %407 = vmatmul.bf16.gmra.mxu0 %v345
      %v408 = vpop.f32.mrf.mxu0
      %v409 = vadd.f32 %v334, %v408
      %v410 = vpop.f32.mrf.mxu0
      %v411 = vadd.f32 %v334, %v410
      %412 = vmatmul.bf16.gmra.mxu0 %v348
      %v413 = vpop.f32.mrf.mxu0
      %v414 = vadd.f32 %v334, %v413
      %v415 = vpop.f32.mrf.mxu0
      %v416 = vadd.f32 %v334, %v415
      %417 = vmatmul.bf16.gmra.mxu0 %v351
      %v418 = vpop.f32.mrf.mxu0
      %v419 = vadd.f32 %v334, %v418
      %v420 = vpop.f32.mrf.mxu0
      %v421 = vadd.f32 %v334, %v420
      %422 = vmatmul.bf16.gmra.mxu0 %v354
      %v423 = vpop.f32.mrf.mxu0
      %v424 = vadd.f32 %v334, %v423
      %v425 = vpop.f32.mrf.mxu0
      %v426 = vadd.f32 %v334, %v425
      %427 = vmatmul.bf16.gmra.mxu0 %v357
      %v428 = vpop.f32.mrf.mxu0
      %v429 = vadd.f32 %v334, %v428
      %v430 = vpop.f32.mrf.mxu0
      %v431 = vadd.f32 %v334, %v430
      %432 = vmatmul.bf16.gmra.mxu0 %v360
      %v433 = vpop.f32.mrf.mxu0
      %v434 = vadd.f32 %v334, %v433
      %v435 = vpop.f32.mrf.mxu0
      %v436 = vadd.f32 %v334, %v435
      %437 = vmatmul.bf16.gmra.mxu0 %v363
      %v438 = vpop.f32.mrf.mxu0
      %v439 = vadd.f32 %v334, %v438
      %v440 = vpop.f32.mrf.mxu0
      %v441 = vadd.f32 %v334, %v440
      %442 = vmatmul.bf16.gmra.mxu0 %v366
      %v443 = vpop.f32.mrf.mxu0
      %v444 = vadd.f32 %v334, %v443
      %v445 = vpop.f32.mrf.mxu0
      %v446 = vadd.f32 %v334, %v445
      %447 = vmatmul.bf16.gmra.mxu0 %v369
      %v448 = vpop.f32.mrf.mxu0
      %v449 = vadd.f32 %v334, %v448
      %v450 = vpop.f32.mrf.mxu0
      %v451 = vadd.f32 %v334, %v450
      %452 = vmatmul.bf16.gmra.mxu0 %v372
      %v453 = vpop.f32.mrf.mxu0
      %v454 = vadd.f32 %v334, %v453
      %v455 = vpop.f32.mrf.mxu0
      %v456 = vadd.f32 %v334, %v455
      %457 = vmatmul.bf16.gmra.mxu0 %v375
      %v458 = vpop.f32.mrf.mxu0
      %v459 = vadd.f32 %v334, %v458
      %v460 = vpop.f32.mrf.mxu0
      %v461 = vadd.f32 %v334, %v460
      %462 = vmatmul.bf16.gmra.mxu0 %v378
      %v463 = vpop.f32.mrf.mxu0
      %v464 = vadd.f32 %v334, %v463
      %v465 = vpop.f32.mrf.mxu0
      %v466 = vadd.f32 %v334, %v465
      %467 = vmatmul.bf16.gmra.mxu0 %v381
      %v468 = vpop.f32.mrf.mxu0
      %v469 = vadd.f32 %v334, %v468
      %v470 = vpop.f32.mrf.mxu0
      %v471 = vadd.f32 %v334, %v470
      %472 = vmatmul.bf16.gmra.mxu0 %v384
      %v473 = vpop.f32.mrf.mxu0
      %v474 = vadd.f32 %v334, %v473
      %v475 = vpop.f32.mrf.mxu0
      %v476 = vadd.f32 %v334, %v475
      %477 = vmatmul.bf16.gmra.mxu0 %v387
      %v478 = vpop.f32.mrf.mxu0
      %v479 = vadd.f32 %v334, %v478
      %v480 = vpop.f32.mrf.mxu0
      %v481 = vadd.f32 %v334, %v480
      %482 = vmatmul.bf16.gmra.mxu0 %v390
      %v483 = vpop.f32.mrf.mxu0
      %v484 = vadd.f32 %v334, %v483
      %v485 = vpop.f32.mrf.mxu0
      %v486 = vadd.f32 %v334, %v485
      %487 = vdwg.mxu0
      %488 = vmatpush.bf16.msra.mxu0 0
      %489 = vmatpush.bf16.msra.mxu0 0
      %490 = vmatpush.bf16.msra.mxu0 0
      %491 = vmatpush.bf16.msra.mxu0 0
      %492 = vmatpush.bf16.msra.mxu0 0
      %493 = vmatpush.bf16.msra.mxu0 0
      %494 = vmatpush.bf16.msra.mxu0 0
      %495 = vmatpush.bf16.msra.mxu0 %v397
      %496 = vmatmul.bf16.gmra.mxu0 %v345
      %v497 = vpop.f32.mrf.mxu0
      %v498 = vadd.f32 %v335, %v497
      %v499 = vpop.f32.mrf.mxu0
      %v500 = vadd.f32 %v335, %v499
      %501 = vmatmul.bf16.gmra.mxu0 %v348
      %v502 = vpop.f32.mrf.mxu0
      %v503 = vadd.f32 %v335, %v502
      %v504 = vpop.f32.mrf.mxu0
      %v505 = vadd.f32 %v335, %v504
      %506 = vmatmul.bf16.gmra.mxu0 %v351
      %v507 = vpop.f32.mrf.mxu0
      %v508 = vadd.f32 %v335, %v507
      %v509 = vpop.f32.mrf.mxu0
      %v510 = vadd.f32 %v335, %v509
      %511 = vmatmul.bf16.gmra.mxu0 %v354
      %v512 = vpop.f32.mrf.mxu0
      %v513 = vadd.f32 %v335, %v512
      %v514 = vpop.f32.mrf.mxu0
      %v515 = vadd.f32 %v335, %v514
      %516 = vmatmul.bf16.gmra.mxu0 %v357
      %v517 = vpop.f32.mrf.mxu0
      %v518 = vadd.f32 %v335, %v517
      %v519 = vpop.f32.mrf.mxu0
      %v520 = vadd.f32 %v335, %v519
      %521 = vmatmul.bf16.gmra.mxu0 %v360
      %v522 = vpop.f32.mrf.mxu0
      %v523 = vadd.f32 %v335, %v522
      %v524 = vpop.f32.mrf.mxu0
      %v525 = vadd.f32 %v335, %v524
      %526 = vmatmul.bf16.gmra.mxu0 %v363
      %v527 = vpop.f32.mrf.mxu0
      %v528 = vadd.f32 %v335, %v527
      %v529 = vpop.f32.mrf.mxu0
      %v530 = vadd.f32 %v335, %v529
      %531 = vmatmul.bf16.gmra.mxu0 %v366
      %v532 = vpop.f32.mrf.mxu0
      %v533 = vadd.f32 %v335, %v532
      %v534 = vpop.f32.mrf.mxu0
      %v535 = vadd.f32 %v335, %v534
      %536 = vmatmul.bf16.gmra.mxu0 %v369
      %v537 = vpop.f32.mrf.mxu0
      %v538 = vadd.f32 %v335, %v537
      %v539 = vpop.f32.mrf.mxu0
      %v540 = vadd.f32 %v335, %v539
      %541 = vmatmul.bf16.gmra.mxu0 %v372
      %v542 = vpop.f32.mrf.mxu0
      %v543 = vadd.f32 %v335, %v542
      %v544 = vpop.f32.mrf.mxu0
      %v545 = vadd.f32 %v335, %v544
      %546 = vmatmul.bf16.gmra.mxu0 %v375
      %v547 = vpop.f32.mrf.mxu0
      %v548 = vadd.f32 %v335, %v547
      %v549 = vpop.f32.mrf.mxu0
      %v550 = vadd.f32 %v335, %v549
      %551 = vmatmul.bf16.gmra.mxu0 %v378
      %v552 = vpop.f32.mrf.mxu0
      %v553 = vadd.f32 %v335, %v552
      %v554 = vpop.f32.mrf.mxu0
      %v555 = vadd.f32 %v335, %v554
      %556 = vmatmul.bf16.gmra.mxu0 %v381
      %v557 = vpop.f32.mrf.mxu0
      %v558 = vadd.f32 %v335, %v557
      %v559 = vpop.f32.mrf.mxu0
      %v560 = vadd.f32 %v335, %v559
      %561 = vmatmul.bf16.gmra.mxu0 %v384
      %v562 = vpop.f32.mrf.mxu0
      %v563 = vadd.f32 %v335, %v562
      %v564 = vpop.f32.mrf.mxu0
      %v565 = vadd.f32 %v335, %v564
      %566 = vmatmul.bf16.gmra.mxu0 %v387
      %v567 = vpop.f32.mrf.mxu0
      %v568 = vadd.f32 %v335, %v567
      %v569 = vpop.f32.mrf.mxu0
      %v570 = vadd.f32 %v335, %v569
      %571 = vmatmul.bf16.gmra.mxu0 %v390
      %v572 = vpop.f32.mrf.mxu0
      %v573 = vadd.f32 %v335, %v572
      %v574 = vpop.f32.mrf.mxu0
      %v575 = vadd.f32 %v335, %v574
      %576 = vdwg.mxu0
      %v577 = vmax.f32 %v409, 0.0
      %v578 = vmax.f32 %v498, 0.0
      %v579 = vmax.f32 %v411, 0.0
      %v580 = vmax.f32 %v500, 0.0
      %v581 = vmax.f32 %v414, 0.0
      %v582 = vmax.f32 %v503, 0.0
      %v583 = vmax.f32 %v416, 0.0
      %v584 = vmax.f32 %v505, 0.0
      %v585 = vmax.f32 %v419, 0.0
      %v586 = vmax.f32 %v508, 0.0
      %v587 = vmax.f32 %v421, 0.0
      %v588 = vmax.f32 %v510, 0.0
      %v589 = vmax.f32 %v424, 0.0
      %v590 = vmax.f32 %v513, 0.0
      %v591 = vmax.f32 %v426, 0.0
      %v592 = vmax.f32 %v515, 0.0
      %v593 = vmax.f32 %v429, 0.0
      %v594 = vmax.f32 %v518, 0.0
      %v595 = vmax.f32 %v431, 0.0
      %v596 = vmax.f32 %v520, 0.0
      %v597 = vmax.f32 %v434, 0.0
      %v598 = vmax.f32 %v523, 0.0
      %v599 = vmax.f32 %v436, 0.0
      %v600 = vmax.f32 %v525, 0.0
      %v601 = vmax.f32 %v439, 0.0
      %v602 = vmax.f32 %v528, 0.0
      %v603 = vmax.f32 %v441, 0.0
      %v604 = vmax.f32 %v530, 0.0
      %v605 = vmax.f32 %v444, 0.0
      %v606 = vmax.f32 %v533, 0.0
      %v607 = vmax.f32 %v446, 0.0
      %v608 = vmax.f32 %v535, 0.0
      %v609 = vmax.f32 %v449, 0.0
      %v610 = vmax.f32 %v538, 0.0
      %v611 = vmax.f32 %v451, 0.0
      %v612 = vmax.f32 %v540, 0.0
      %v613 = vmax.f32 %v454, 0.0
      %v614 = vmax.f32 %v543, 0.0
      %v615 = vmax.f32 %v456, 0.0
      %v616 = vmax.f32 %v545, 0.0
      %v617 = vmax.f32 %v459, 0.0
      %v618 = vmax.f32 %v548, 0.0
      %v619 = vmax.f32 %v461, 0.0
      %v620 = vmax.f32 %v550, 0.0
      %v621 = vmax.f32 %v464, 0.0
      %v622 = vmax.f32 %v553, 0.0
      %v623 = vmax.f32 %v466, 0.0
      %v624 = vmax.f32 %v555, 0.0
      %v625 = vmax.f32 %v469, 0.0
      %v626 = vmax.f32 %v558, 0.0
      %v627 = vmax.f32 %v471, 0.0
      %v628 = vmax.f32 %v560, 0.0
      %v629 = vmax.f32 %v474, 0.0
      %v630 = vmax.f32 %v563, 0.0
      %v631 = vmax.f32 %v476, 0.0
      %v632 = vmax.f32 %v565, 0.0
      %v633 = vmax.f32 %v479, 0.0
      %v634 = vmax.f32 %v568, 0.0
      %v635 = vmax.f32 %v481, 0.0
      %v636 = vmax.f32 %v570, 0.0
      %v637 = vmax.f32 %v484, 0.0
      %v638 = vmax.f32 %v573, 0.0
      %v639 = vmax.f32 %v486, 0.0
      %v640 = vmax.f32 %v575, 0.0
      %v641 = vpack.c.bf16 %v579, %v577
      %v642 = vpack.c.bf16 %v580, %v578
      %v643 = vpack.c.bf16 %v583, %v581
      %v644 = vpack.c.bf16 %v584, %v582
      %v645 = vpack.c.bf16 %v587, %v585
      %v646 = vpack.c.bf16 %v588, %v586
      %v647 = vpack.c.bf16 %v591, %v589
      %v648 = vpack.c.bf16 %v592, %v590
      %v649 = vpack.c.bf16 %v595, %v593
      %v650 = vpack.c.bf16 %v596, %v594
      %v651 = vpack.c.bf16 %v599, %v597
      %v652 = vpack.c.bf16 %v600, %v598
      %v653 = vpack.c.bf16 %v603, %v601
      %v654 = vpack.c.bf16 %v604, %v602
      %v655 = vpack.c.bf16 %v607, %v605
      %v656 = vpack.c.bf16 %v608, %v606
      %v657 = vpack.c.bf16 %v611, %v609
      %v658 = vpack.c.bf16 %v612, %v610
      %v659 = vpack.c.bf16 %v615, %v613
      %v660 = vpack.c.bf16 %v616, %v614
      %v661 = vpack.c.bf16 %v619, %v617
      %v662 = vpack.c.bf16 %v620, %v618
      %v663 = vpack.c.bf16 %v623, %v621
      %v664 = vpack.c.bf16 %v624, %v622
      %v665 = vpack.c.bf16 %v627, %v625
      %v666 = vpack.c.bf16 %v628, %v626
      %v667 = vpack.c.bf16 %v631, %v629
      %v668 = vpack.c.bf16 %v632, %v630
      %v669 = vpack.c.bf16 %v635, %v633
      %v670 = vpack.c.bf16 %v636, %v634
      %v671 = vpack.c.bf16 %v639, %v637
      %v672 = vpack.c.bf16 %v640, %v638
      %v673 = vld [vmem:[%s3] sm:$0xff]
      %v674 = vld [vmem:[%s3 + $0x8] sm:$0xff]
      %v675 = vld [vmem:[%s3 + $0x10] sm:$0xff]
      %v676 = vld [vmem:[%s3 + $0x18] sm:$0xff]
      %v677 = vld [vmem:[%s3 + $0x20] sm:$0xff]
      %v678 = vld [vmem:[%s3 + $0x28] sm:$0xff]
      %v679 = vld [vmem:[%s3 + $0x30] sm:$0xff]
      %v680 = vld [vmem:[%s3 + $0x38] sm:$0xff]
      %v681 = vld [vmem:[%s3 + $0x40] sm:$0xff]
      %v682 = vld [vmem:[%s3 + $0x48] sm:$0xff]
      %v683 = vld [vmem:[%s3 + $0x50] sm:$0xff]
      %v684 = vld [vmem:[%s3 + $0x58] sm:$0xff]
      %v685 = vld [vmem:[%s3 + $0x60] sm:$0xff]
      %v686 = vld [vmem:[%s3 + $0x68] sm:$0xff]
      %v687 = vld [vmem:[%s3 + $0x70] sm:$0xff]
      %v688 = vld [vmem:[%s3 + $0x78] sm:$0xff]
      %v689 = vld [vmem:[%s3 + $0x80] sm:$0xff]
      %v690 = vld [vmem:[%s3 + $0x88] sm:$0xff]
      %v691 = vld [vmem:[%s3 + $0x90] sm:$0xff]
      %v692 = vld [vmem:[%s3 + $0x98] sm:$0xff]
      %v693 = vld [vmem:[%s3 + $0xa0] sm:$0xff]
      %v694 = vld [vmem:[%s3 + $0xa8] sm:$0xff]
      %v695 = vld [vmem:[%s3 + $0xb0] sm:$0xff]
      %v696 = vld [vmem:[%s3 + $0xb8] sm:$0xff]
      %v697 = vld [vmem:[%s3 + $0xc0] sm:$0xff]
      %v698 = vld [vmem:[%s3 + $0xc8] sm:$0xff]
      %v699 = vld [vmem:[%s3 + $0xd0] sm:$0xff]
      %v700 = vld [vmem:[%s3 + $0xd8] sm:$0xff]
      %v701 = vld [vmem:[%s3 + $0xe0] sm:$0xff]
      %v702 = vld [vmem:[%s3 + $0xe8] sm:$0xff]
      %v703 = vld [vmem:[%s3 + $0xf0] sm:$0xff]
      %v704 = vld [vmem:[%s3 + $0xf8] sm:$0xff]
      %v705 = vld [vmem:[%s4] sm:$0x3]
      %v707 = vperm.slane %v705, 0
      %v708 = vperm.slane %v705, 1
      %v743 = vunpack.c.l.b16 %v673
      %v744 = vunpack.c.h.b16 %v673
      %v745 = vunpack.c.l.b16 %v674
      %v746 = vunpack.c.h.b16 %v674
      %v747 = vunpack.c.l.b16 %v675
      %v748 = vunpack.c.h.b16 %v675
      %v749 = vunpack.c.l.b16 %v676
      %v750 = vunpack.c.h.b16 %v676
      %v751 = vunpack.c.l.b16 %v677
      %v752 = vunpack.c.h.b16 %v677
      %v753 = vunpack.c.l.b16 %v678
      %v754 = vunpack.c.h.b16 %v678
      %v755 = vunpack.c.l.b16 %v679
      %v756 = vunpack.c.h.b16 %v679
      %v757 = vunpack.c.l.b16 %v680
      %v758 = vunpack.c.h.b16 %v680
      %v759 = vunpack.c.l.b16 %v681
      %v760 = vunpack.c.h.b16 %v681
      %v761 = vunpack.c.l.b16 %v682
      %v762 = vunpack.c.h.b16 %v682
      %v763 = vunpack.c.l.b16 %v683
      %v764 = vunpack.c.h.b16 %v683
      %v765 = vunpack.c.l.b16 %v684
      %v766 = vunpack.c.h.b16 %v684
      %v767 = vunpack.c.l.b16 %v685
      %v768 = vunpack.c.h.b16 %v685
      %v769 = vunpack.c.l.b16 %v686
      %v770 = vunpack.c.h.b16 %v686
      %v771 = vunpack.c.l.b16 %v687
      %v772 = vunpack.c.h.b16 %v687
      %v773 = vunpack.c.l.b16 %v688
      %v774 = vunpack.c.h.b16 %v688
      %v775 = vunpack.c.l.b16 %v689
      %v776 = vunpack.c.h.b16 %v689
      %v777 = vunpack.c.l.b16 %v690
      %v778 = vunpack.c.h.b16 %v690
      %v779 = vunpack.c.l.b16 %v691
      %v780 = vunpack.c.h.b16 %v691
      %v781 = vunpack.c.l.b16 %v692
      %v782 = vunpack.c.h.b16 %v692
      %v783 = vunpack.c.l.b16 %v693
      %v784 = vunpack.c.h.b16 %v693
      %v785 = vunpack.c.l.b16 %v694
      %v786 = vunpack.c.h.b16 %v694
      %v787 = vunpack.c.l.b16 %v695
      %v788 = vunpack.c.h.b16 %v695
      %v789 = vunpack.c.l.b16 %v696
      %v790 = vunpack.c.h.b16 %v696
      %v791 = vunpack.c.l.b16 %v697
      %v792 = vunpack.c.h.b16 %v697
      %v793 = vunpack.c.l.b16 %v698
      %v794 = vunpack.c.h.b16 %v698
      %v795 = vunpack.c.l.b16 %v699
      %v796 = vunpack.c.h.b16 %v699
      %v797 = vunpack.c.l.b16 %v700
      %v798 = vunpack.c.h.b16 %v700
      %v799 = vunpack.c.l.b16 %v701
      %v800 = vunpack.c.h.b16 %v701
      %v801 = vunpack.c.l.b16 %v702
      %v802 = vunpack.c.h.b16 %v702
      %v803 = vunpack.c.l.b16 %v703
      %v804 = vunpack.c.h.b16 %v703
      %v805 = vunpack.c.l.b16 %v704
      %v806 = vunpack.c.h.b16 %v704
      %v807 = vpack.c.b16 %v745, %v743
      %v808 = vpack.c.b16 %v746, %v744
      %v809 = vpack.c.b16 %v749, %v747
      %v810 = vpack.c.b16 %v750, %v748
      %v811 = vpack.c.b16 %v753, %v751
      %v812 = vpack.c.b16 %v754, %v752
      %v813 = vpack.c.b16 %v757, %v755
      %v814 = vpack.c.b16 %v758, %v756
      %v815 = vpack.c.b16 %v761, %v759
      %v816 = vpack.c.b16 %v762, %v760
      %v817 = vpack.c.b16 %v765, %v763
      %v818 = vpack.c.b16 %v766, %v764
      %v819 = vpack.c.b16 %v769, %v767
      %v820 = vpack.c.b16 %v770, %v768
      %v821 = vpack.c.b16 %v773, %v771
      %v822 = vpack.c.b16 %v774, %v772
      %v823 = vpack.c.b16 %v777, %v775
      %v824 = vpack.c.b16 %v778, %v776
      %v825 = vpack.c.b16 %v781, %v779
      %v826 = vpack.c.b16 %v782, %v780
      %v827 = vpack.c.b16 %v785, %v783
      %v828 = vpack.c.b16 %v786, %v784
      %v829 = vpack.c.b16 %v789, %v787
      %v830 = vpack.c.b16 %v790, %v788
      %v831 = vpack.c.b16 %v793, %v791
      %v832 = vpack.c.b16 %v794, %v792
      %v833 = vpack.c.b16 %v797, %v795
      %v834 = vpack.c.b16 %v798, %v796
      %v835 = vpack.c.b16 %v801, %v799
      %v836 = vpack.c.b16 %v802, %v800
      %v837 = vpack.c.b16 %v805, %v803
      %v838 = vpack.c.b16 %v806, %v804
      %871 = vmatpush.bf16.msra.mxu0 %v821
      %872 = vmatpush.bf16.msra.mxu0 %v819
      %873 = vmatpush.bf16.msra.mxu0 %v817
      %874 = vmatpush.bf16.msra.mxu0 %v815
      %875 = vmatpush.bf16.msra.mxu0 %v813
      %876 = vmatpush.bf16.msra.mxu0 %v811
      %877 = vmatpush.bf16.msra.mxu0 %v809
      %878 = vmatpush.bf16.msra.mxu0 %v807
      %879 = vmatmul.bf16.gmra.mxu0 %v641
      %v880 = vpop.f32.mrf.mxu0
      %v881 = vadd.f32 %v707, %v880
      %v882 = vpop.f32.mrf.mxu0
      %v883 = vadd.f32 %v707, %v882
      %884 = vmatmul.bf16.gmra.mxu0 %v643
      %v885 = vpop.f32.mrf.mxu0
      %v886 = vadd.f32 %v707, %v885
      %v887 = vpop.f32.mrf.mxu0
      %v888 = vadd.f32 %v707, %v887
      %889 = vmatmul.bf16.gmra.mxu0 %v645
      %v890 = vpop.f32.mrf.mxu0
      %v891 = vadd.f32 %v707, %v890
      %v892 = vpop.f32.mrf.mxu0
      %v893 = vadd.f32 %v707, %v892
      %894 = vmatmul.bf16.gmra.mxu0 %v647
      %v895 = vpop.f32.mrf.mxu0
      %v896 = vadd.f32 %v707, %v895
      %v897 = vpop.f32.mrf.mxu0
      %v898 = vadd.f32 %v707, %v897
      %899 = vmatmul.bf16.gmra.mxu0 %v649
      %v900 = vpop.f32.mrf.mxu0
      %v901 = vadd.f32 %v707, %v900
      %v902 = vpop.f32.mrf.mxu0
      %v903 = vadd.f32 %v707, %v902
      %904 = vmatmul.bf16.gmra.mxu0 %v651
      %v905 = vpop.f32.mrf.mxu0
      %v906 = vadd.f32 %v707, %v905
      %v907 = vpop.f32.mrf.mxu0
      %v908 = vadd.f32 %v707, %v907
      %909 = vmatmul.bf16.gmra.mxu0 %v653
      %v910 = vpop.f32.mrf.mxu0
      %v911 = vadd.f32 %v707, %v910
      %v912 = vpop.f32.mrf.mxu0
      %v913 = vadd.f32 %v707, %v912
      %914 = vmatmul.bf16.gmra.mxu0 %v655
      %v915 = vpop.f32.mrf.mxu0
      %v916 = vadd.f32 %v707, %v915
      %v917 = vpop.f32.mrf.mxu0
      %v918 = vadd.f32 %v707, %v917
      %919 = vmatmul.bf16.gmra.mxu0 %v657
      %v920 = vpop.f32.mrf.mxu0
      %v921 = vadd.f32 %v707, %v920
      %v922 = vpop.f32.mrf.mxu0
      %v923 = vadd.f32 %v707, %v922
      %924 = vmatmul.bf16.gmra.mxu0 %v659
      %v925 = vpop.f32.mrf.mxu0
      %v926 = vadd.f32 %v707, %v925
      %v927 = vpop.f32.mrf.mxu0
      %v928 = vadd.f32 %v707, %v927
      %929 = vmatmul.bf16.gmra.mxu0 %v661
      %v930 = vpop.f32.mrf.mxu0
      %v931 = vadd.f32 %v707, %v930
      %v932 = vpop.f32.mrf.mxu0
      %v933 = vadd.f32 %v707, %v932
      %934 = vmatmul.bf16.gmra.mxu0 %v663
      %v935 = vpop.f32.mrf.mxu0
      %v936 = vadd.f32 %v707, %v935
      %v937 = vpop.f32.mrf.mxu0
      %v938 = vadd.f32 %v707, %v937
      %939 = vmatmul.bf16.gmra.mxu0 %v665
      %v940 = vpop.f32.mrf.mxu0
      %v941 = vadd.f32 %v707, %v940
      %v942 = vpop.f32.mrf.mxu0
      %v943 = vadd.f32 %v707, %v942
      %944 = vmatmul.bf16.gmra.mxu0 %v667
      %v945 = vpop.f32.mrf.mxu0
      %v946 = vadd.f32 %v707, %v945
      %v947 = vpop.f32.mrf.mxu0
      %v948 = vadd.f32 %v707, %v947
      %949 = vmatmul.bf16.gmra.mxu0 %v669
      %v950 = vpop.f32.mrf.mxu0
      %v951 = vadd.f32 %v707, %v950
      %v952 = vpop.f32.mrf.mxu0
      %v953 = vadd.f32 %v707, %v952
      %954 = vmatmul.bf16.gmra.mxu0 %v671
      %v955 = vpop.f32.mrf.mxu0
      %v956 = vadd.f32 %v707, %v955
      %v957 = vpop.f32.mrf.mxu0
      %v958 = vadd.f32 %v707, %v957
      %959 = vdwg.mxu0
      %960 = vmatpush.bf16.msra.mxu0 %v837
      %961 = vmatpush.bf16.msra.mxu0 %v835
      %962 = vmatpush.bf16.msra.mxu0 %v833
      %963 = vmatpush.bf16.msra.mxu0 %v831
      %964 = vmatpush.bf16.msra.mxu0 %v829
      %965 = vmatpush.bf16.msra.mxu0 %v827
      %966 = vmatpush.bf16.msra.mxu0 %v825
      %967 = vmatpush.bf16.msra.mxu0 %v823
      %968 = vmatmul.bf16.gmra.mxu0 %v642
      %v969 = vpop.f32.mrf.mxu0
      %v970 = vadd.f32 %v881, %v969
      %v971 = vpop.f32.mrf.mxu0
      %v972 = vadd.f32 %v883, %v971
      %973 = vmatmul.bf16.gmra.mxu0 %v644
      %v974 = vpop.f32.mrf.mxu0
      %v975 = vadd.f32 %v886, %v974
      %v976 = vpop.f32.mrf.mxu0
      %v977 = vadd.f32 %v888, %v976
      %978 = vmatmul.bf16.gmra.mxu0 %v646
      %v979 = vpop.f32.mrf.mxu0
      %v980 = vadd.f32 %v891, %v979
      %v981 = vpop.f32.mrf.mxu0
      %v982 = vadd.f32 %v893, %v981
      %983 = vmatmul.bf16.gmra.mxu0 %v648
      %v984 = vpop.f32.mrf.mxu0
      %v985 = vadd.f32 %v896, %v984
      %v986 = vpop.f32.mrf.mxu0
      %v987 = vadd.f32 %v898, %v986
      %988 = vmatmul.bf16.gmra.mxu0 %v650
      %v989 = vpop.f32.mrf.mxu0
      %v990 = vadd.f32 %v901, %v989
      %v991 = vpop.f32.mrf.mxu0
      %v992 = vadd.f32 %v903, %v991
      %993 = vmatmul.bf16.gmra.mxu0 %v652
      %v994 = vpop.f32.mrf.mxu0
      %v995 = vadd.f32 %v906, %v994
      %v996 = vpop.f32.mrf.mxu0
      %v997 = vadd.f32 %v908, %v996
      %998 = vmatmul.bf16.gmra.mxu0 %v654
      %v999 = vpop.f32.mrf.mxu0
      %v1000 = vadd.f32 %v911, %v999
      %v1001 = vpop.f32.mrf.mxu0
      %v1002 = vadd.f32 %v913, %v1001
      %1003 = vmatmul.bf16.gmra.mxu0 %v656
      %v1004 = vpop.f32.mrf.mxu0
      %v1005 = vadd.f32 %v916, %v1004
      %v1006 = vpop.f32.mrf.mxu0
      %v1007 = vadd.f32 %v918, %v1006
      %1008 = vmatmul.bf16.gmra.mxu0 %v658
      %v1009 = vpop.f32.mrf.mxu0
      %v1010 = vadd.f32 %v921, %v1009
      %v1011 = vpop.f32.mrf.mxu0
      %v1012 = vadd.f32 %v923, %v1011
      %1013 = vmatmul.bf16.gmra.mxu0 %v660
      %v1014 = vpop.f32.mrf.mxu0
      %v1015 = vadd.f32 %v926, %v1014
      %v1016 = vpop.f32.mrf.mxu0
      %v1017 = vadd.f32 %v928, %v1016
      %1018 = vmatmul.bf16.gmra.mxu0 %v662
      %v1019 = vpop.f32.mrf.mxu0
      %v1020 = vadd.f32 %v931, %v1019
      %v1021 = vpop.f32.mrf.mxu0
      %v1022 = vadd.f32 %v933, %v1021
      %1023 = vmatmul.bf16.gmra.mxu0 %v664
      %v1024 = vpop.f32.mrf.mxu0
      %v1025 = vadd.f32 %v936, %v1024
      %v1026 = vpop.f32.mrf.mxu0
      %v1027 = vadd.f32 %v938, %v1026
      %1028 = vmatmul.bf16.gmra.mxu0 %v666
      %v1029 = vpop.f32.mrf.mxu0
      %v1030 = vadd.f32 %v941, %v1029
      %v1031 = vpop.f32.mrf.mxu0
      %v1032 = vadd.f32 %v943, %v1031
      %1033 = vmatmul.bf16.gmra.mxu0 %v668
      %v1034 = vpop.f32.mrf.mxu0
      %v1035 = vadd.f32 %v946, %v1034
      %v1036 = vpop.f32.mrf.mxu0
      %v1037 = vadd.f32 %v948, %v1036
      %1038 = vmatmul.bf16.gmra.mxu0 %v670
      %v1039 = vpop.f32.mrf.mxu0
      %v1040 = vadd.f32 %v951, %v1039
      %v1041 = vpop.f32.mrf.mxu0
      %v1042 = vadd.f32 %v953, %v1041
      %1043 = vmatmul.bf16.gmra.mxu0 %v672
      %v1044 = vpop.f32.mrf.mxu0
      %v1045 = vadd.f32 %v956, %v1044
      %v1046 = vpop.f32.mrf.mxu0
      %v1047 = vadd.f32 %v958, %v1046
      %1048 = vdwg.mxu0
      %1049 = vmatpush.bf16.msra.mxu0 %v822
      %1050 = vmatpush.bf16.msra.mxu0 %v820
      %1051 = vmatpush.bf16.msra.mxu0 %v818
      %1052 = vmatpush.bf16.msra.mxu0 %v816
      %1053 = vmatpush.bf16.msra.mxu0 %v814
      %1054 = vmatpush.bf16.msra.mxu0 %v812
      %1055 = vmatpush.bf16.msra.mxu0 %v810
      %1056 = vmatpush.bf16.msra.mxu0 %v808
      %1057 = vmatmul.bf16.gmra.mxu0 %v641
      %v1058 = vpop.f32.mrf.mxu0
      %v1059 = vadd.f32 %v708, %v1058
      %v1060 = vpop.f32.mrf.mxu0
      %v1061 = vadd.f32 %v708, %v1060
      %1062 = vmatmul.bf16.gmra.mxu0 %v643
      %v1063 = vpop.f32.mrf.mxu0
      %v1064 = vadd.f32 %v708, %v1063
      %v1065 = vpop.f32.mrf.mxu0
      %v1066 = vadd.f32 %v708, %v1065
      %1067 = vmatmul.bf16.gmra.mxu0 %v645
      %v1068 = vpop.f32.mrf.mxu0
      %v1069 = vadd.f32 %v708, %v1068
      %v1070 = vpop.f32.mrf.mxu0
      %v1071 = vadd.f32 %v708, %v1070
      %1072 = vmatmul.bf16.gmra.mxu0 %v647
      %v1073 = vpop.f32.mrf.mxu0
      %v1074 = vadd.f32 %v708, %v1073
      %v1075 = vpop.f32.mrf.mxu0
      %v1076 = vadd.f32 %v708, %v1075
      %1077 = vmatmul.bf16.gmra.mxu0 %v649
      %v1078 = vpop.f32.mrf.mxu0
      %v1079 = vadd.f32 %v708, %v1078
      %v1080 = vpop.f32.mrf.mxu0
      %v1081 = vadd.f32 %v708, %v1080
      %1082 = vmatmul.bf16.gmra.mxu0 %v651
      %v1083 = vpop.f32.mrf.mxu0
      %v1084 = vadd.f32 %v708, %v1083
      %v1085 = vpop.f32.mrf.mxu0
      %v1086 = vadd.f32 %v708, %v1085
      %1087 = vmatmul.bf16.gmra.mxu0 %v653
      %v1088 = vpop.f32.mrf.mxu0
      %v1089 = vadd.f32 %v708, %v1088
      %v1090 = vpop.f32.mrf.mxu0
      %v1091 = vadd.f32 %v708, %v1090
      %1092 = vmatmul.bf16.gmra.mxu0 %v655
      %v1093 = vpop.f32.mrf.mxu0
      %v1094 = vadd.f32 %v708, %v1093
      %v1095 = vpop.f32.mrf.mxu0
      %v1096 = vadd.f32 %v708, %v1095
      %1097 = vmatmul.bf16.gmra.mxu0 %v657
      %v1098 = vpop.f32.mrf.mxu0
      %v1099 = vadd.f32 %v708, %v1098
      %v1100 = vpop.f32.mrf.mxu0
      %v1101 = vadd.f32 %v708, %v1100
      %1102 = vmatmul.bf16.gmra.mxu0 %v659
      %v1103 = vpop.f32.mrf.mxu0
      %v1104 = vadd.f32 %v708, %v1103
      %v1105 = vpop.f32.mrf.mxu0
      %v1106 = vadd.f32 %v708, %v1105
      %1107 = vmatmul.bf16.gmra.mxu0 %v661
      %v1108 = vpop.f32.mrf.mxu0
      %v1109 = vadd.f32 %v708, %v1108
      %v1110 = vpop.f32.mrf.mxu0
      %v1111 = vadd.f32 %v708, %v1110
      %1112 = vmatmul.bf16.gmra.mxu0 %v663
      %v1113 = vpop.f32.mrf.mxu0
      %v1114 = vadd.f32 %v708, %v1113
      %v1115 = vpop.f32.mrf.mxu0
      %v1116 = vadd.f32 %v708, %v1115
      %1117 = vmatmul.bf16.gmra.mxu0 %v665
      %v1118 = vpop.f32.mrf.mxu0
      %v1119 = vadd.f32 %v708, %v1118
      %v1120 = vpop.f32.mrf.mxu0
      %v1121 = vadd.f32 %v708, %v1120
      %1122 = vmatmul.bf16.gmra.mxu0 %v667
      %v1123 = vpop.f32.mrf.mxu0
      %v1124 = vadd.f32 %v708, %v1123
      %v1125 = vpop.f32.mrf.mxu0
      %v1126 = vadd.f32 %v708, %v1125
      %1127 = vmatmul.bf16.gmra.mxu0 %v669
      %v1128 = vpop.f32.mrf.mxu0
      %v1129 = vadd.f32 %v708, %v1128
      %v1130 = vpop.f32.mrf.mxu0
      %v1131 = vadd.f32 %v708, %v1130
      %1132 = vmatmul.bf16.gmra.mxu0 %v671
      %v1133 = vpop.f32.mrf.mxu0
      %v1134 = vadd.f32 %v708, %v1133
      %v1135 = vpop.f32.mrf.mxu0
      %v1136 = vadd.f32 %v708, %v1135
      %1137 = vdwg.mxu0
      %1138 = vmatpush.bf16.msra.mxu0 %v838
      %1139 = vmatpush.bf16.msra.mxu0 %v836
      %1140 = vmatpush.bf16.msra.mxu0 %v834
      %1141 = vmatpush.bf16.msra.mxu0 %v832
      %1142 = vmatpush.bf16.msra.mxu0 %v830
      %1143 = vmatpush.bf16.msra.mxu0 %v828
      %1144 = vmatpush.bf16.msra.mxu0 %v826
      %1145 = vmatpush.bf16.msra.mxu0 %v824
      %1146 = vmatmul.bf16.gmra.mxu0 %v642
      %v1147 = vpop.f32.mrf.mxu0
      %v1148 = vadd.f32 %v1059, %v1147
      %v1149 = vpop.f32.mrf.mxu0
      %v1150 = vadd.f32 %v1061, %v1149
      %1151 = vmatmul.bf16.gmra.mxu0 %v644
      %v1152 = vpop.f32.mrf.mxu0
      %v1153 = vadd.f32 %v1064, %v1152
      %v1154 = vpop.f32.mrf.mxu0
      %v1155 = vadd.f32 %v1066, %v1154
      %1156 = vmatmul.bf16.gmra.mxu0 %v646
      %v1157 = vpop.f32.mrf.mxu0
      %v1158 = vadd.f32 %v1069, %v1157
      %v1159 = vpop.f32.mrf.mxu0
      %v1160 = vadd.f32 %v1071, %v1159
      %1161 = vmatmul.bf16.gmra.mxu0 %v648
      %v1162 = vpop.f32.mrf.mxu0
      %v1163 = vadd.f32 %v1074, %v1162
      %v1164 = vpop.f32.mrf.mxu0
      %v1165 = vadd.f32 %v1076, %v1164
      %1166 = vmatmul.bf16.gmra.mxu0 %v650
      %v1167 = vpop.f32.mrf.mxu0
      %v1168 = vadd.f32 %v1079, %v1167
      %v1169 = vpop.f32.mrf.mxu0
      %v1170 = vadd.f32 %v1081, %v1169
      %1171 = vmatmul.bf16.gmra.mxu0 %v652
      %v1172 = vpop.f32.mrf.mxu0
      %v1173 = vadd.f32 %v1084, %v1172
      %v1174 = vpop.f32.mrf.mxu0
      %v1175 = vadd.f32 %v1086, %v1174
      %1176 = vmatmul.bf16.gmra.mxu0 %v654
      %v1177 = vpop.f32.mrf.mxu0
      %v1178 = vadd.f32 %v1089, %v1177
      %v1179 = vpop.f32.mrf.mxu0
      %v1180 = vadd.f32 %v1091, %v1179
      %1181 = vmatmul.bf16.gmra.mxu0 %v656
      %v1182 = vpop.f32.mrf.mxu0
      %v1183 = vadd.f32 %v1094, %v1182
      %v1184 = vpop.f32.mrf.mxu0
      %v1185 = vadd.f32 %v1096, %v1184
      %1186 = vmatmul.bf16.gmra.mxu0 %v658
      %v1187 = vpop.f32.mrf.mxu0
      %v1188 = vadd.f32 %v1099, %v1187
      %v1189 = vpop.f32.mrf.mxu0
      %v1190 = vadd.f32 %v1101, %v1189
      %1191 = vmatmul.bf16.gmra.mxu0 %v660
      %v1192 = vpop.f32.mrf.mxu0
      %v1193 = vadd.f32 %v1104, %v1192
      %v1194 = vpop.f32.mrf.mxu0
      %v1195 = vadd.f32 %v1106, %v1194
      %1196 = vmatmul.bf16.gmra.mxu0 %v662
      %v1197 = vpop.f32.mrf.mxu0
      %v1198 = vadd.f32 %v1109, %v1197
      %v1199 = vpop.f32.mrf.mxu0
      %v1200 = vadd.f32 %v1111, %v1199
      %1201 = vmatmul.bf16.gmra.mxu0 %v664
      %v1202 = vpop.f32.mrf.mxu0
      %v1203 = vadd.f32 %v1114, %v1202
      %v1204 = vpop.f32.mrf.mxu0
      %v1205 = vadd.f32 %v1116, %v1204
      %1206 = vmatmul.bf16.gmra.mxu0 %v666
      %v1207 = vpop.f32.mrf.mxu0
      %v1208 = vadd.f32 %v1119, %v1207
      %v1209 = vpop.f32.mrf.mxu0
      %v1210 = vadd.f32 %v1121, %v1209
      %1211 = vmatmul.bf16.gmra.mxu0 %v668
      %v1212 = vpop.f32.mrf.mxu0
      %v1213 = vadd.f32 %v1124, %v1212
      %v1214 = vpop.f32.mrf.mxu0
      %v1215 = vadd.f32 %v1126, %v1214
      %1216 = vmatmul.bf16.gmra.mxu0 %v670
      %v1217 = vpop.f32.mrf.mxu0
      %v1218 = vadd.f32 %v1129, %v1217
      %v1219 = vpop.f32.mrf.mxu0
      %v1220 = vadd.f32 %v1131, %v1219
      %1221 = vmatmul.bf16.gmra.mxu0 %v672
      %v1222 = vpop.f32.mrf.mxu0
      %v1223 = vadd.f32 %v1134, %v1222
      %v1224 = vpop.f32.mrf.mxu0
      %v1225 = vadd.f32 %v1136, %v1224
      %1226 = vdwg.mxu0
      %v1227 = vmax.f32 %v970, 0.0
      %v1228 = vmax.f32 %v1148, 0.0
      %v1229 = vmax.f32 %v972, 0.0
      %v1230 = vmax.f32 %v1150, 0.0
      %v1231 = vmax.f32 %v975, 0.0
      %v1232 = vmax.f32 %v1153, 0.0
      %v1233 = vmax.f32 %v977, 0.0
      %v1234 = vmax.f32 %v1155, 0.0
      %v1235 = vmax.f32 %v980, 0.0
      %v1236 = vmax.f32 %v1158, 0.0
      %v1237 = vmax.f32 %v982, 0.0
      %v1238 = vmax.f32 %v1160, 0.0
      %v1239 = vmax.f32 %v985, 0.0
      %v1240 = vmax.f32 %v1163, 0.0
      %v1241 = vmax.f32 %v987, 0.0
      %v1242 = vmax.f32 %v1165, 0.0
      %v1243 = vmax.f32 %v990, 0.0
      %v1244 = vmax.f32 %v1168, 0.0
      %v1245 = vmax.f32 %v992, 0.0
      %v1246 = vmax.f32 %v1170, 0.0
      %v1247 = vmax.f32 %v995, 0.0
      %v1248 = vmax.f32 %v1173, 0.0
      %v1249 = vmax.f32 %v997, 0.0
      %v1250 = vmax.f32 %v1175, 0.0
      %v1251 = vmax.f32 %v1000, 0.0
      %v1252 = vmax.f32 %v1178, 0.0
      %v1253 = vmax.f32 %v1002, 0.0
      %v1254 = vmax.f32 %v1180, 0.0
      %v1255 = vmax.f32 %v1005, 0.0
      %v1256 = vmax.f32 %v1183, 0.0
      %v1257 = vmax.f32 %v1007, 0.0
      %v1258 = vmax.f32 %v1185, 0.0
      %v1259 = vmax.f32 %v1010, 0.0
      %v1260 = vmax.f32 %v1188, 0.0
      %v1261 = vmax.f32 %v1012, 0.0
      %v1262 = vmax.f32 %v1190, 0.0
      %v1263 = vmax.f32 %v1015, 0.0
      %v1264 = vmax.f32 %v1193, 0.0
      %v1265 = vmax.f32 %v1017, 0.0
      %v1266 = vmax.f32 %v1195, 0.0
      %v1267 = vmax.f32 %v1020, 0.0
      %v1268 = vmax.f32 %v1198, 0.0
      %v1269 = vmax.f32 %v1022, 0.0
      %v1270 = vmax.f32 %v1200, 0.0
      %v1271 = vmax.f32 %v1025, 0.0
      %v1272 = vmax.f32 %v1203, 0.0
      %v1273 = vmax.f32 %v1027, 0.0
      %v1274 = vmax.f32 %v1205, 0.0
      %v1275 = vmax.f32 %v1030, 0.0
      %v1276 = vmax.f32 %v1208, 0.0
      %v1277 = vmax.f32 %v1032, 0.0
      %v1278 = vmax.f32 %v1210, 0.0
      %v1279 = vmax.f32 %v1035, 0.0
      %v1280 = vmax.f32 %v1213, 0.0
      %v1281 = vmax.f32 %v1037, 0.0
      %v1282 = vmax.f32 %v1215, 0.0
      %v1283 = vmax.f32 %v1040, 0.0
      %v1284 = vmax.f32 %v1218, 0.0
      %v1285 = vmax.f32 %v1042, 0.0
      %v1286 = vmax.f32 %v1220, 0.0
      %v1287 = vmax.f32 %v1045, 0.0
      %v1288 = vmax.f32 %v1223, 0.0
      %v1289 = vmax.f32 %v1047, 0.0
      %v1290 = vmax.f32 %v1225, 0.0
      %v1291 = vpack.c.bf16 %v1229, %v1227
      %v1292 = vpack.c.bf16 %v1230, %v1228
      %v1293 = vpack.c.bf16 %v1233, %v1231
      %v1294 = vpack.c.bf16 %v1234, %v1232
      %v1295 = vpack.c.bf16 %v1237, %v1235
      %v1296 = vpack.c.bf16 %v1238, %v1236
      %v1297 = vpack.c.bf16 %v1241, %v1239
      %v1298 = vpack.c.bf16 %v1242, %v1240
      %v1299 = vpack.c.bf16 %v1245, %v1243
      %v1300 = vpack.c.bf16 %v1246, %v1244
      %v1301 = vpack.c.bf16 %v1249, %v1247
      %v1302 = vpack.c.bf16 %v1250, %v1248
      %v1303 = vpack.c.bf16 %v1253, %v1251
      %v1304 = vpack.c.bf16 %v1254, %v1252
      %v1305 = vpack.c.bf16 %v1257, %v1255
      %v1306 = vpack.c.bf16 %v1258, %v1256
      %v1307 = vpack.c.bf16 %v1261, %v1259
      %v1308 = vpack.c.bf16 %v1262, %v1260
      %v1309 = vpack.c.bf16 %v1265, %v1263
      %v1310 = vpack.c.bf16 %v1266, %v1264
      %v1311 = vpack.c.bf16 %v1269, %v1267
      %v1312 = vpack.c.bf16 %v1270, %v1268
      %v1313 = vpack.c.bf16 %v1273, %v1271
      %v1314 = vpack.c.bf16 %v1274, %v1272
      %v1315 = vpack.c.bf16 %v1277, %v1275
      %v1316 = vpack.c.bf16 %v1278, %v1276
      %v1317 = vpack.c.bf16 %v1281, %v1279
      %v1318 = vpack.c.bf16 %v1282, %v1280
      %v1319 = vpack.c.bf16 %v1285, %v1283
      %v1320 = vpack.c.bf16 %v1286, %v1284
      %v1321 = vpack.c.bf16 %v1289, %v1287
      %v1322 = vpack.c.bf16 %v1290, %v1288
      %v1323 = vld [vmem:[%s5] sm:$0xf]
      %v1324 = vld [vmem:[%s5 + $0x4] sm:$0xf]
      %v1325 = vld [vmem:[%s5 + $0x8] sm:$0xf]
      %v1326 = vld [vmem:[%s5 + $0xc] sm:$0xf]
      %v1327 = vld [vmem:[%s5 + $0x10] sm:$0xf]
      %v1328 = vld [vmem:[%s5 + $0x14] sm:$0xf]
      %v1329 = vld [vmem:[%s5 + $0x18] sm:$0xf]
      %v1330 = vld [vmem:[%s5 + $0x1c] sm:$0xf]
      %v1331 = vld [vmem:[%s5 + $0x20] sm:$0xf]
      %v1332 = vld [vmem:[%s5 + $0x24] sm:$0xf]
      %v1333 = vld [vmem:[%s5 + $0x28] sm:$0xf]
      %v1334 = vld [vmem:[%s5 + $0x2c] sm:$0xf]
      %v1335 = vld [vmem:[%s5 + $0x30] sm:$0xf]
      %v1336 = vld [vmem:[%s5 + $0x34] sm:$0xf]
      %v1337 = vld [vmem:[%s5 + $0x38] sm:$0xf]
      %v1338 = vld [vmem:[%s5 + $0x3c] sm:$0xf]
      %v1339 = vld [vmem:[%s5 + $0x40] sm:$0xf]
      %v1340 = vld [vmem:[%s5 + $0x44] sm:$0xf]
      %v1341 = vld [vmem:[%s5 + $0x48] sm:$0xf]
      %v1342 = vld [vmem:[%s5 + $0x4c] sm:$0xf]
      %v1343 = vld [vmem:[%s5 + $0x50] sm:$0xf]
      %v1344 = vld [vmem:[%s5 + $0x54] sm:$0xf]
      %v1345 = vld [vmem:[%s5 + $0x58] sm:$0xf]
      %v1346 = vld [vmem:[%s5 + $0x5c] sm:$0xf]
      %v1347 = vld [vmem:[%s5 + $0x60] sm:$0xf]
      %v1348 = vld [vmem:[%s5 + $0x64] sm:$0xf]
      %v1349 = vld [vmem:[%s5 + $0x68] sm:$0xf]
      %v1350 = vld [vmem:[%s5 + $0x6c] sm:$0xf]
      %v1351 = vld [vmem:[%s5 + $0x70] sm:$0xf]
      %v1352 = vld [vmem:[%s5 + $0x74] sm:$0xf]
      %v1353 = vld [vmem:[%s5 + $0x78] sm:$0xf]
      %v1354 = vld [vmem:[%s5 + $0x7c] sm:$0xf]
      %v1355 = vld [vmem:[%s6] sm:$0x1]
      %v1357 = vperm.slane %v1355, 0
      %v1391 = vunpack.c.l.b16 %v1323
      %v1392 = vunpack.c.l.b16 %v1324
      %v1393 = vunpack.c.l.b16 %v1325
      %v1394 = vunpack.c.l.b16 %v1326
      %v1395 = vunpack.c.l.b16 %v1327
      %v1396 = vunpack.c.l.b16 %v1328
      %v1397 = vunpack.c.l.b16 %v1329
      %v1398 = vunpack.c.l.b16 %v1330
      %v1399 = vunpack.c.l.b16 %v1331
      %v1400 = vunpack.c.l.b16 %v1332
      %v1401 = vunpack.c.l.b16 %v1333
      %v1402 = vunpack.c.l.b16 %v1334
      %v1403 = vunpack.c.l.b16 %v1335
      %v1404 = vunpack.c.l.b16 %v1336
      %v1405 = vunpack.c.l.b16 %v1337
      %v1406 = vunpack.c.l.b16 %v1338
      %v1407 = vunpack.c.l.b16 %v1339
      %v1408 = vunpack.c.l.b16 %v1340
      %v1409 = vunpack.c.l.b16 %v1341
      %v1410 = vunpack.c.l.b16 %v1342
      %v1411 = vunpack.c.l.b16 %v1343
      %v1412 = vunpack.c.l.b16 %v1344
      %v1413 = vunpack.c.l.b16 %v1345
      %v1414 = vunpack.c.l.b16 %v1346
      %v1415 = vunpack.c.l.b16 %v1347
      %v1416 = vunpack.c.l.b16 %v1348
      %v1417 = vunpack.c.l.b16 %v1349
      %v1418 = vunpack.c.l.b16 %v1350
      %v1419 = vunpack.c.l.b16 %v1351
      %v1420 = vunpack.c.l.b16 %v1352
      %v1421 = vunpack.c.l.b16 %v1353
      %v1422 = vunpack.c.l.b16 %v1354
      %v1423 = vpack.c.b16 %v1392, %v1391
      %v1424 = vpack.c.b16 %v1394, %v1393
      %v1425 = vpack.c.b16 %v1396, %v1395
      %v1426 = vpack.c.b16 %v1398, %v1397
      %v1427 = vpack.c.b16 %v1400, %v1399
      %v1428 = vpack.c.b16 %v1402, %v1401
      %v1429 = vpack.c.b16 %v1404, %v1403
      %v1430 = vpack.c.b16 %v1406, %v1405
      %v1431 = vpack.c.b16 %v1408, %v1407
      %v1432 = vpack.c.b16 %v1410, %v1409
      %v1433 = vpack.c.b16 %v1412, %v1411
      %v1434 = vpack.c.b16 %v1414, %v1413
      %v1435 = vpack.c.b16 %v1416, %v1415
      %v1436 = vpack.c.b16 %v1418, %v1417
      %v1437 = vpack.c.b16 %v1420, %v1419
      %v1438 = vpack.c.b16 %v1422, %v1421
      %1455 = vmatpush.bf16.msra.mxu0 %v1430
      %1456 = vmatpush.bf16.msra.mxu0 %v1429
      %1457 = vmatpush.bf16.msra.mxu0 %v1428
      %1458 = vmatpush.bf16.msra.mxu0 %v1427
      %1459 = vmatpush.bf16.msra.mxu0 %v1426
      %1460 = vmatpush.bf16.msra.mxu0 %v1425
      %1461 = vmatpush.bf16.msra.mxu0 %v1424
      %1462 = vmatpush.bf16.msra.mxu0 %v1423
      %1463 = vmatmul.bf16.gmra.mxu0 %v1291
      %v1464 = vpop.f32.mrf.mxu0
      %v1465 = vadd.f32 %v1357, %v1464
      %v1466 = vpop.f32.mrf.mxu0
      %v1467 = vadd.f32 %v1357, %v1466
      %1468 = vmatmul.bf16.gmra.mxu0 %v1293
      %v1469 = vpop.f32.mrf.mxu0
      %v1470 = vadd.f32 %v1357, %v1469
      %v1471 = vpop.f32.mrf.mxu0
      %v1472 = vadd.f32 %v1357, %v1471
      %1473 = vmatmul.bf16.gmra.mxu0 %v1295
      %v1474 = vpop.f32.mrf.mxu0
      %v1475 = vadd.f32 %v1357, %v1474
      %v1476 = vpop.f32.mrf.mxu0
      %v1477 = vadd.f32 %v1357, %v1476
      %1478 = vmatmul.bf16.gmra.mxu0 %v1297
      %v1479 = vpop.f32.mrf.mxu0
      %v1480 = vadd.f32 %v1357, %v1479
      %v1481 = vpop.f32.mrf.mxu0
      %v1482 = vadd.f32 %v1357, %v1481
      %1483 = vmatmul.bf16.gmra.mxu0 %v1299
      %v1484 = vpop.f32.mrf.mxu0
      %v1485 = vadd.f32 %v1357, %v1484
      %v1486 = vpop.f32.mrf.mxu0
      %v1487 = vadd.f32 %v1357, %v1486
      %1488 = vmatmul.bf16.gmra.mxu0 %v1301
      %v1489 = vpop.f32.mrf.mxu0
      %v1490 = vadd.f32 %v1357, %v1489
      %v1491 = vpop.f32.mrf.mxu0
      %v1492 = vadd.f32 %v1357, %v1491
      %1493 = vmatmul.bf16.gmra.mxu0 %v1303
      %v1494 = vpop.f32.mrf.mxu0
      %v1495 = vadd.f32 %v1357, %v1494
      %v1496 = vpop.f32.mrf.mxu0
      %v1497 = vadd.f32 %v1357, %v1496
      %1498 = vmatmul.bf16.gmra.mxu0 %v1305
      %v1499 = vpop.f32.mrf.mxu0
      %v1500 = vadd.f32 %v1357, %v1499
      %v1501 = vpop.f32.mrf.mxu0
      %v1502 = vadd.f32 %v1357, %v1501
      %1503 = vmatmul.bf16.gmra.mxu0 %v1307
      %v1504 = vpop.f32.mrf.mxu0
      %v1505 = vadd.f32 %v1357, %v1504
      %v1506 = vpop.f32.mrf.mxu0
      %v1507 = vadd.f32 %v1357, %v1506
      %1508 = vmatmul.bf16.gmra.mxu0 %v1309
      %v1509 = vpop.f32.mrf.mxu0
      %v1510 = vadd.f32 %v1357, %v1509
      %v1511 = vpop.f32.mrf.mxu0
      %v1512 = vadd.f32 %v1357, %v1511
      %1513 = vmatmul.bf16.gmra.mxu0 %v1311
      %v1514 = vpop.f32.mrf.mxu0
      %v1515 = vadd.f32 %v1357, %v1514
      %v1516 = vpop.f32.mrf.mxu0
      %v1517 = vadd.f32 %v1357, %v1516
      %1518 = vmatmul.bf16.gmra.mxu0 %v1313
      %v1519 = vpop.f32.mrf.mxu0
      %v1520 = vadd.f32 %v1357, %v1519
      %v1521 = vpop.f32.mrf.mxu0
      %v1522 = vadd.f32 %v1357, %v1521
      %1523 = vmatmul.bf16.gmra.mxu0 %v1315
      %v1524 = vpop.f32.mrf.mxu0
      %v1525 = vadd.f32 %v1357, %v1524
      %v1526 = vpop.f32.mrf.mxu0
      %v1527 = vadd.f32 %v1357, %v1526
      %1528 = vmatmul.bf16.gmra.mxu0 %v1317
      %v1529 = vpop.f32.mrf.mxu0
      %v1530 = vadd.f32 %v1357, %v1529
      %v1531 = vpop.f32.mrf.mxu0
      %v1532 = vadd.f32 %v1357, %v1531
      %1533 = vmatmul.bf16.gmra.mxu0 %v1319
      %v1534 = vpop.f32.mrf.mxu0
      %v1535 = vadd.f32 %v1357, %v1534
      %v1536 = vpop.f32.mrf.mxu0
      %v1537 = vadd.f32 %v1357, %v1536
      %1538 = vmatmul.bf16.gmra.mxu0 %v1321
      %v1539 = vpop.f32.mrf.mxu0
      %v1540 = vadd.f32 %v1357, %v1539
      %v1541 = vpop.f32.mrf.mxu0
      %v1542 = vadd.f32 %v1357, %v1541
      %1543 = vdwg.mxu0
      %1544 = vmatpush.bf16.msra.mxu0 %v1438
      %1545 = vmatpush.bf16.msra.mxu0 %v1437
      %1546 = vmatpush.bf16.msra.mxu0 %v1436
      %1547 = vmatpush.bf16.msra.mxu0 %v1435
      %1548 = vmatpush.bf16.msra.mxu0 %v1434
      %1549 = vmatpush.bf16.msra.mxu0 %v1433
      %1550 = vmatpush.bf16.msra.mxu0 %v1432
      %1551 = vmatpush.bf16.msra.mxu0 %v1431
      %1552 = vmatmul.bf16.gmra.mxu0 %v1292
      %v1553 = vpop.f32.mrf.mxu0
      %v1554 = vadd.f32 %v1465, %v1553
      %v1555 = vpop.f32.mrf.mxu0
      %v1556 = vadd.f32 %v1467, %v1555
      %1557 = vmatmul.bf16.gmra.mxu0 %v1294
      %v1558 = vpop.f32.mrf.mxu0
      %v1559 = vadd.f32 %v1470, %v1558
      %v1560 = vpop.f32.mrf.mxu0
      %v1561 = vadd.f32 %v1472, %v1560
      %1562 = vmatmul.bf16.gmra.mxu0 %v1296
      %v1563 = vpop.f32.mrf.mxu0
      %v1564 = vadd.f32 %v1475, %v1563
      %v1565 = vpop.f32.mrf.mxu0
      %v1566 = vadd.f32 %v1477, %v1565
      %1567 = vmatmul.bf16.gmra.mxu0 %v1298
      %v1568 = vpop.f32.mrf.mxu0
      %v1569 = vadd.f32 %v1480, %v1568
      %v1570 = vpop.f32.mrf.mxu0
      %v1571 = vadd.f32 %v1482, %v1570
      %1572 = vmatmul.bf16.gmra.mxu0 %v1300
      %v1573 = vpop.f32.mrf.mxu0
      %v1574 = vadd.f32 %v1485, %v1573
      %v1575 = vpop.f32.mrf.mxu0
      %v1576 = vadd.f32 %v1487, %v1575
      %1577 = vmatmul.bf16.gmra.mxu0 %v1302
      %v1578 = vpop.f32.mrf.mxu0
      %v1579 = vadd.f32 %v1490, %v1578
      %v1580 = vpop.f32.mrf.mxu0
      %v1581 = vadd.f32 %v1492, %v1580
      %1582 = vmatmul.bf16.gmra.mxu0 %v1304
      %v1583 = vpop.f32.mrf.mxu0
      %v1584 = vadd.f32 %v1495, %v1583
      %v1585 = vpop.f32.mrf.mxu0
      %v1586 = vadd.f32 %v1497, %v1585
      %1587 = vmatmul.bf16.gmra.mxu0 %v1306
      %v1588 = vpop.f32.mrf.mxu0
      %v1589 = vadd.f32 %v1500, %v1588
      %v1590 = vpop.f32.mrf.mxu0
      %v1591 = vadd.f32 %v1502, %v1590
      %1592 = vmatmul.bf16.gmra.mxu0 %v1308
      %v1593 = vpop.f32.mrf.mxu0
      %v1594 = vadd.f32 %v1505, %v1593
      %v1595 = vpop.f32.mrf.mxu0
      %v1596 = vadd.f32 %v1507, %v1595
      %1597 = vmatmul.bf16.gmra.mxu0 %v1310
      %v1598 = vpop.f32.mrf.mxu0
      %v1599 = vadd.f32 %v1510, %v1598
      %v1600 = vpop.f32.mrf.mxu0
      %v1601 = vadd.f32 %v1512, %v1600
      %1602 = vmatmul.bf16.gmra.mxu0 %v1312
      %v1603 = vpop.f32.mrf.mxu0
      %v1604 = vadd.f32 %v1515, %v1603
      %v1605 = vpop.f32.mrf.mxu0
      %v1606 = vadd.f32 %v1517, %v1605
      %1607 = vmatmul.bf16.gmra.mxu0 %v1314
      %v1608 = vpop.f32.mrf.mxu0
      %v1609 = vadd.f32 %v1520, %v1608
      %v1610 = vpop.f32.mrf.mxu0
      %v1611 = vadd.f32 %v1522, %v1610
      %1612 = vmatmul.bf16.gmra.mxu0 %v1316
      %v1613 = vpop.f32.mrf.mxu0
      %v1614 = vadd.f32 %v1525, %v1613
      %v1615 = vpop.f32.mrf.mxu0
      %v1616 = vadd.f32 %v1527, %v1615
      %1617 = vmatmul.bf16.gmra.mxu0 %v1318
      %v1618 = vpop.f32.mrf.mxu0
      %v1619 = vadd.f32 %v1530, %v1618
      %v1620 = vpop.f32.mrf.mxu0
      %v1621 = vadd.f32 %v1532, %v1620
      %1622 = vmatmul.bf16.gmra.mxu0 %v1320
      %v1623 = vpop.f32.mrf.mxu0
      %v1624 = vadd.f32 %v1535, %v1623
      %v1625 = vpop.f32.mrf.mxu0
      %v1626 = vadd.f32 %v1537, %v1625
      %1627 = vmatmul.bf16.gmra.mxu0 %v1322
      %v1628 = vpop.f32.mrf.mxu0
      %v1629 = vadd.f32 %v1540, %v1628
      %v1630 = vpop.f32.mrf.mxu0
      %v1631 = vadd.f32 %v1542, %v1630
      %1632 = vdwg.mxu0
      %1633 = vmax.xlane.f32.xlu0 %v1554
      %v1634 = vpop.xlane.xlu0 %1633
      %1635 = vmax.xlane.f32.xlu0 %v1556
      %v1636 = vpop.xlane.xlu0 %1635
      %1637 = vmax.xlane.f32.xlu0 %v1559
      %v1638 = vpop.xlane.xlu0 %1637
      %1639 = vmax.xlane.f32.xlu0 %v1561
      %v1640 = vpop.xlane.xlu0 %1639
      %1641 = vmax.xlane.f32.xlu0 %v1564
      %v1642 = vpop.xlane.xlu0 %1641
      %1643 = vmax.xlane.f32.xlu0 %v1566
      %v1644 = vpop.xlane.xlu0 %1643
      %1645 = vmax.xlane.f32.xlu0 %v1569
      %v1646 = vpop.xlane.xlu0 %1645
      %1647 = vmax.xlane.f32.xlu0 %v1571
      %v1648 = vpop.xlane.xlu0 %1647
      %1649 = vmax.xlane.f32.xlu0 %v1574
      %v1650 = vpop.xlane.xlu0 %1649
      %1651 = vmax.xlane.f32.xlu0 %v1576
      %v1652 = vpop.xlane.xlu0 %1651
      %1653 = vmax.xlane.f32.xlu0 %v1579
      %v1654 = vpop.xlane.xlu0 %1653
      %1655 = vmax.xlane.f32.xlu0 %v1581
      %v1656 = vpop.xlane.xlu0 %1655
      %1657 = vmax.xlane.f32.xlu0 %v1584
      %v1658 = vpop.xlane.xlu0 %1657
      %1659 = vmax.xlane.f32.xlu0 %v1586
      %v1660 = vpop.xlane.xlu0 %1659
      %1661 = vmax.xlane.f32.xlu0 %v1589
      %v1662 = vpop.xlane.xlu0 %1661
      %1663 = vmax.xlane.f32.xlu0 %v1591
      %v1664 = vpop.xlane.xlu0 %1663
      %1665 = vmax.xlane.f32.xlu0 %v1594
      %v1666 = vpop.xlane.xlu0 %1665
      %1667 = vmax.xlane.f32.xlu0 %v1596
      %v1668 = vpop.xlane.xlu0 %1667
      %1669 = vmax.xlane.f32.xlu0 %v1599
      %v1670 = vpop.xlane.xlu0 %1669
      %1671 = vmax.xlane.f32.xlu0 %v1601
      %v1672 = vpop.xlane.xlu0 %1671
      %1673 = vmax.xlane.f32.xlu0 %v1604
      %v1674 = vpop.xlane.xlu0 %1673
      %1675 = vmax.xlane.f32.xlu0 %v1606
      %v1676 = vpop.xlane.xlu0 %1675
      %1677 = vmax.xlane.f32.xlu0 %v1609
      %v1678 = vpop.xlane.xlu0 %1677
      %1679 = vmax.xlane.f32.xlu0 %v1611
      %v1680 = vpop.xlane.xlu0 %1679
      %1681 = vmax.xlane.f32.xlu0 %v1614
      %v1682 = vpop.xlane.xlu0 %1681
      %1683 = vmax.xlane.f32.xlu0 %v1616
      %v1684 = vpop.xlane.xlu0 %1683
      %1685 = vmax.xlane.f32.xlu0 %v1619
      %v1686 = vpop.xlane.xlu0 %1685
      %1687 = vmax.xlane.f32.xlu0 %v1621
      %v1688 = vpop.xlane.xlu0 %1687
      %1689 = vmax.xlane.f32.xlu0 %v1624
      %v1690 = vpop.xlane.xlu0 %1689
      %1691 = vmax.xlane.f32.xlu0 %v1626
      %v1692 = vpop.xlane.xlu0 %1691
      %1693 = vmax.xlane.f32.xlu0 %v1629
      %v1694 = vpop.xlane.xlu0 %1693
      %1695 = vmax.xlane.f32.xlu0 %v1631
      %v1696 = vpop.xlane.xlu0 %1695
      %v1697 = vsub.f32 %v1554, %v1634
      %v1698 = vsub.f32 %v1556, %v1636
      %v1699 = vsub.f32 %v1559, %v1638
      %v1700 = vsub.f32 %v1561, %v1640
      %v1701 = vsub.f32 %v1564, %v1642
      %v1702 = vsub.f32 %v1566, %v1644
      %v1703 = vsub.f32 %v1569, %v1646
      %v1704 = vsub.f32 %v1571, %v1648
      %v1705 = vsub.f32 %v1574, %v1650
      %v1706 = vsub.f32 %v1576, %v1652
      %v1707 = vsub.f32 %v1579, %v1654
      %v1708 = vsub.f32 %v1581, %v1656
      %v1709 = vsub.f32 %v1584, %v1658
      %v1710 = vsub.f32 %v1586, %v1660
      %v1711 = vsub.f32 %v1589, %v1662
      %v1712 = vsub.f32 %v1591, %v1664
      %v1713 = vsub.f32 %v1594, %v1666
      %v1714 = vsub.f32 %v1596, %v1668
      %v1715 = vsub.f32 %v1599, %v1670
      %v1716 = vsub.f32 %v1601, %v1672
      %v1717 = vsub.f32 %v1604, %v1674
      %v1718 = vsub.f32 %v1606, %v1676
      %v1719 = vsub.f32 %v1609, %v1678
      %v1720 = vsub.f32 %v1611, %v1680
      %v1721 = vsub.f32 %v1614, %v1682
      %v1722 = vsub.f32 %v1616, %v1684
      %v1723 = vsub.f32 %v1619, %v1686
      %v1724 = vsub.f32 %v1621, %v1688
      %v1725 = vsub.f32 %v1624, %v1690
      %v1726 = vsub.f32 %v1626, %v1692
      %v1727 = vsub.f32 %v1629, %v1694
      %v1728 = vsub.f32 %v1631, %v1696
      %v1729 = vmul.f32 %v1697, 1.442695
      %v1730 = vpow.pop %v1729
      %v1731 = vmul.f32 %v1698, 1.442695
      %v1732 = vpow.pop %v1731
      %v1733 = vmul.f32 %v1699, 1.442695
      %v1734 = vpow.pop %v1733
      %v1735 = vmul.f32 %v1700, 1.442695
      %v1736 = vpow.pop %v1735
      %v1737 = vmul.f32 %v1701, 1.442695
      %v1738 = vpow.pop %v1737
      %v1739 = vmul.f32 %v1702, 1.442695
      %v1740 = vpow.pop %v1739
      %v1741 = vmul.f32 %v1703, 1.442695
      %v1742 = vpow.pop %v1741
      %v1743 = vmul.f32 %v1704, 1.442695
      %v1744 = vpow.pop %v1743
      %v1745 = vmul.f32 %v1705, 1.442695
      %v1746 = vpow.pop %v1745
      %v1747 = vmul.f32 %v1706, 1.442695
      %v1748 = vpow.pop %v1747
      %v1749 = vmul.f32 %v1707, 1.442695
      %v1750 = vpow.pop %v1749
      %v1751 = vmul.f32 %v1708, 1.442695
      %v1752 = vpow.pop %v1751
      %v1753 = vmul.f32 %v1709, 1.442695
      %v1754 = vpow.pop %v1753
      %v1755 = vmul.f32 %v1710, 1.442695
      %v1756 = vpow.pop %v1755
      %v1757 = vmul.f32 %v1711, 1.442695
      %v1758 = vpow.pop %v1757
      %v1759 = vmul.f32 %v1712, 1.442695
      %v1760 = vpow.pop %v1759
      %v1761 = vmul.f32 %v1713, 1.442695
      %v1762 = vpow.pop %v1761
      %v1763 = vmul.f32 %v1714, 1.442695
      %v1764 = vpow.pop %v1763
      %v1765 = vmul.f32 %v1715, 1.442695
      %v1766 = vpow.pop %v1765
      %v1767 = vmul.f32 %v1716, 1.442695
      %v1768 = vpow.pop %v1767
      %v1769 = vmul.f32 %v1717, 1.442695
      %v1770 = vpow.pop %v1769
      %v1771 = vmul.f32 %v1718, 1.442695
      %v1772 = vpow.pop %v1771
      %v1773 = vmul.f32 %v1719, 1.442695
      %v1774 = vpow.pop %v1773
      %v1775 = vmul.f32 %v1720, 1.442695
      %v1776 = vpow.pop %v1775
      %v1777 = vmul.f32 %v1721, 1.442695
      %v1778 = vpow.pop %v1777
      %v1779 = vmul.f32 %v1722, 1.442695
      %v1780 = vpow.pop %v1779
      %v1781 = vmul.f32 %v1723, 1.442695
      %v1782 = vpow.pop %v1781
      %v1783 = vmul.f32 %v1724, 1.442695
      %v1784 = vpow.pop %v1783
      %v1785 = vmul.f32 %v1725, 1.442695
      %v1786 = vpow.pop %v1785
      %v1787 = vmul.f32 %v1726, 1.442695
      %v1788 = vpow.pop %v1787
      %v1789 = vmul.f32 %v1727, 1.442695
      %v1790 = vpow.pop %v1789
      %v1791 = vmul.f32 %v1728, 1.442695
      %v1792 = vpow.pop %v1791
      %1793 = vadd.xlane.f32.xlu0 %v1730
      %v1794 = vpop.xlane.xlu0 %1793
      %1795 = vadd.xlane.f32.xlu0 %v1732
      %v1796 = vpop.xlane.xlu0 %1795
      %1797 = vadd.xlane.f32.xlu0 %v1734
      %v1798 = vpop.xlane.xlu0 %1797
      %1799 = vadd.xlane.f32.xlu0 %v1736
      %v1800 = vpop.xlane.xlu0 %1799
      %1801 = vadd.xlane.f32.xlu0 %v1738
      %v1802 = vpop.xlane.xlu0 %1801
      %1803 = vadd.xlane.f32.xlu0 %v1740
      %v1804 = vpop.xlane.xlu0 %1803
      %1805 = vadd.xlane.f32.xlu0 %v1742
      %v1806 = vpop.xlane.xlu0 %1805
      %1807 = vadd.xlane.f32.xlu0 %v1744
      %v1808 = vpop.xlane.xlu0 %1807
      %1809 = vadd.xlane.f32.xlu0 %v1746
      %v1810 = vpop.xlane.xlu0 %1809
      %1811 = vadd.xlane.f32.xlu0 %v1748
      %v1812 = vpop.xlane.xlu0 %1811
      %1813 = vadd.xlane.f32.xlu0 %v1750
      %v1814 = vpop.xlane.xlu0 %1813
      %1815 = vadd.xlane.f32.xlu0 %v1752
      %v1816 = vpop.xlane.xlu0 %1815
      %1817 = vadd.xlane.f32.xlu0 %v1754
      %v1818 = vpop.xlane.xlu0 %1817
      %1819 = vadd.xlane.f32.xlu0 %v1756
      %v1820 = vpop.xlane.xlu0 %1819
      %1821 = vadd.xlane.f32.xlu0 %v1758
      %v1822 = vpop.xlane.xlu0 %1821
      %1823 = vadd.xlane.f32.xlu0 %v1760
      %v1824 = vpop.xlane.xlu0 %1823
      %1825 = vadd.xlane.f32.xlu0 %v1762
      %v1826 = vpop.xlane.xlu0 %1825
      %1827 = vadd.xlane.f32.xlu0 %v1764
      %v1828 = vpop.xlane.xlu0 %1827
      %1829 = vadd.xlane.f32.xlu0 %v1766
      %v1830 = vpop.xlane.xlu0 %1829
      %1831 = vadd.xlane.f32.xlu0 %v1768
      %v1832 = vpop.xlane.xlu0 %1831
      %1833 = vadd.xlane.f32.xlu0 %v1770
      %v1834 = vpop.xlane.xlu0 %1833
      %1835 = vadd.xlane.f32.xlu0 %v1772
      %v1836 = vpop.xlane.xlu0 %1835
      %1837 = vadd.xlane.f32.xlu0 %v1774
      %v1838 = vpop.xlane.xlu0 %1837
      %1839 = vadd.xlane.f32.xlu0 %v1776
      %v1840 = vpop.xlane.xlu0 %1839
      %1841 = vadd.xlane.f32.xlu0 %v1778
      %v1842 = vpop.xlane.xlu0 %1841
      %1843 = vadd.xlane.f32.xlu0 %v1780
      %v1844 = vpop.xlane.xlu0 %1843
      %1845 = vadd.xlane.f32.xlu0 %v1782
      %v1846 = vpop.xlane.xlu0 %1845
      %1847 = vadd.xlane.f32.xlu0 %v1784
      %v1848 = vpop.xlane.xlu0 %1847
      %1849 = vadd.xlane.f32.xlu0 %v1786
      %v1850 = vpop.xlane.xlu0 %1849
      %1851 = vadd.xlane.f32.xlu0 %v1788
      %v1852 = vpop.xlane.xlu0 %1851
      %1853 = vadd.xlane.f32.xlu0 %v1790
      %v1854 = vpop.xlane.xlu0 %1853
      %1855 = vadd.xlane.f32.xlu0 %v1792
      %v1856 = vpop.xlane.xlu0 %1855
      %v1857 = vrcp.pop %v1794
      %v1858 = vmul.f32 %v1794, %v1857
      %v1859 = vsub.f32 1.0, %v1858
      %v1860 = vmul.f32 %v1857, %v1859
      %v1861 = vadd.f32 %v1857, %v1860
      %vm1862 = vweird.f32 %v1794
      %vm1863 = vweird.f32 %v1857
      %vm1864 = vmor %vm1862, %vm1863
      %v1865 = vsel %vm1864, %v1857, %v1861
      %v1866 = vand.u32 2147483647, %v1794
      %vm1867 = vcmp.eq.f32.partialorder %v1866, 8.507059e+37
      %v1868 = vand.u32 %v1794, 2147483648
      %v1869 = vor.u32 1.1754944e-38, %v1868
      %v1870 = vsel %vm1867, %v1869, %v1865
      %v1871 = vrcp.pop %v1796
      %v1872 = vmul.f32 %v1796, %v1871
      %v1873 = vsub.f32 1.0, %v1872
      %v1874 = vmul.f32 %v1871, %v1873
      %v1875 = vadd.f32 %v1871, %v1874
      %vm1876 = vweird.f32 %v1796
      %vm1877 = vweird.f32 %v1871
      %vm1878 = vmor %vm1876, %vm1877
      %v1879 = vsel %vm1878, %v1871, %v1875
      %v1880 = vand.u32 2147483647, %v1796
      %vm1881 = vcmp.eq.f32.partialorder %v1880, 8.507059e+37
      %v1882 = vand.u32 %v1796, 2147483648
      %v1883 = vor.u32 1.1754944e-38, %v1882
      %v1884 = vsel %vm1881, %v1883, %v1879
      %v1885 = vrcp.pop %v1798
      %v1886 = vmul.f32 %v1798, %v1885
      %v1887 = vsub.f32 1.0, %v1886
      %v1888 = vmul.f32 %v1885, %v1887
      %v1889 = vadd.f32 %v1885, %v1888
      %vm1890 = vweird.f32 %v1798
      %vm1891 = vweird.f32 %v1885
      %vm1892 = vmor %vm1890, %vm1891
      %v1893 = vsel %vm1892, %v1885, %v1889
      %v1894 = vand.u32 2147483647, %v1798
      %vm1895 = vcmp.eq.f32.partialorder %v1894, 8.507059e+37
      %v1896 = vand.u32 %v1798, 2147483648
      %v1897 = vor.u32 1.1754944e-38, %v1896
      %v1898 = vsel %vm1895, %v1897, %v1893
      %v1899 = vrcp.pop %v1800
      %v1900 = vmul.f32 %v1800, %v1899
      %v1901 = vsub.f32 1.0, %v1900
      %v1902 = vmul.f32 %v1899, %v1901
      %v1903 = vadd.f32 %v1899, %v1902
      %vm1904 = vweird.f32 %v1800
      %vm1905 = vweird.f32 %v1899
      %vm1906 = vmor %vm1904, %vm1905
      %v1907 = vsel %vm1906, %v1899, %v1903
      %v1908 = vand.u32 2147483647, %v1800
      %vm1909 = vcmp.eq.f32.partialorder %v1908, 8.507059e+37
      %v1910 = vand.u32 %v1800, 2147483648
      %v1911 = vor.u32 1.1754944e-38, %v1910
      %v1912 = vsel %vm1909, %v1911, %v1907
      %v1913 = vrcp.pop %v1802
      %v1914 = vmul.f32 %v1802, %v1913
      %v1915 = vsub.f32 1.0, %v1914
      %v1916 = vmul.f32 %v1913, %v1915
      %v1917 = vadd.f32 %v1913, %v1916
      %vm1918 = vweird.f32 %v1802
      %vm1919 = vweird.f32 %v1913
      %vm1920 = vmor %vm1918, %vm1919
      %v1921 = vsel %vm1920, %v1913, %v1917
      %v1922 = vand.u32 2147483647, %v1802
      %vm1923 = vcmp.eq.f32.partialorder %v1922, 8.507059e+37
      %v1924 = vand.u32 %v1802, 2147483648
      %v1925 = vor.u32 1.1754944e-38, %v1924
      %v1926 = vsel %vm1923, %v1925, %v1921
      %v1927 = vrcp.pop %v1804
      %v1928 = vmul.f32 %v1804, %v1927
      %v1929 = vsub.f32 1.0, %v1928
      %v1930 = vmul.f32 %v1927, %v1929
      %v1931 = vadd.f32 %v1927, %v1930
      %vm1932 = vweird.f32 %v1804
      %vm1933 = vweird.f32 %v1927
      %vm1934 = vmor %vm1932, %vm1933
      %v1935 = vsel %vm1934, %v1927, %v1931
      %v1936 = vand.u32 2147483647, %v1804
      %vm1937 = vcmp.eq.f32.partialorder %v1936, 8.507059e+37
      %v1938 = vand.u32 %v1804, 2147483648
      %v1939 = vor.u32 1.1754944e-38, %v1938
      %v1940 = vsel %vm1937, %v1939, %v1935
      %v1941 = vrcp.pop %v1806
      %v1942 = vmul.f32 %v1806, %v1941
      %v1943 = vsub.f32 1.0, %v1942
      %v1944 = vmul.f32 %v1941, %v1943
      %v1945 = vadd.f32 %v1941, %v1944
      %vm1946 = vweird.f32 %v1806
      %vm1947 = vweird.f32 %v1941
      %vm1948 = vmor %vm1946, %vm1947
      %v1949 = vsel %vm1948, %v1941, %v1945
      %v1950 = vand.u32 2147483647, %v1806
      %vm1951 = vcmp.eq.f32.partialorder %v1950, 8.507059e+37
      %v1952 = vand.u32 %v1806, 2147483648
      %v1953 = vor.u32 1.1754944e-38, %v1952
      %v1954 = vsel %vm1951, %v1953, %v1949
      %v1955 = vrcp.pop %v1808
      %v1956 = vmul.f32 %v1808, %v1955
      %v1957 = vsub.f32 1.0, %v1956
      %v1958 = vmul.f32 %v1955, %v1957
      %v1959 = vadd.f32 %v1955, %v1958
      %vm1960 = vweird.f32 %v1808
      %vm1961 = vweird.f32 %v1955
      %vm1962 = vmor %vm1960, %vm1961
      %v1963 = vsel %vm1962, %v1955, %v1959
      %v1964 = vand.u32 2147483647, %v1808
      %vm1965 = vcmp.eq.f32.partialorder %v1964, 8.507059e+37
      %v1966 = vand.u32 %v1808, 2147483648
      %v1967 = vor.u32 1.1754944e-38, %v1966
      %v1968 = vsel %vm1965, %v1967, %v1963
      %v1969 = vrcp.pop %v1810
      %v1970 = vmul.f32 %v1810, %v1969
      %v1971 = vsub.f32 1.0, %v1970
      %v1972 = vmul.f32 %v1969, %v1971
      %v1973 = vadd.f32 %v1969, %v1972
      %vm1974 = vweird.f32 %v1810
      %vm1975 = vweird.f32 %v1969
      %vm1976 = vmor %vm1974, %vm1975
      %v1977 = vsel %vm1976, %v1969, %v1973
      %v1978 = vand.u32 2147483647, %v1810
      %vm1979 = vcmp.eq.f32.partialorder %v1978, 8.507059e+37
      %v1980 = vand.u32 %v1810, 2147483648
      %v1981 = vor.u32 1.1754944e-38, %v1980
      %v1982 = vsel %vm1979, %v1981, %v1977
      %v1983 = vrcp.pop %v1812
      %v1984 = vmul.f32 %v1812, %v1983
      %v1985 = vsub.f32 1.0, %v1984
      %v1986 = vmul.f32 %v1983, %v1985
      %v1987 = vadd.f32 %v1983, %v1986
      %vm1988 = vweird.f32 %v1812
      %vm1989 = vweird.f32 %v1983
      %vm1990 = vmor %vm1988, %vm1989
      %v1991 = vsel %vm1990, %v1983, %v1987
      %v1992 = vand.u32 2147483647, %v1812
      %vm1993 = vcmp.eq.f32.partialorder %v1992, 8.507059e+37
      %v1994 = vand.u32 %v1812, 2147483648
      %v1995 = vor.u32 1.1754944e-38, %v1994
      %v1996 = vsel %vm1993, %v1995, %v1991
      %v1997 = vrcp.pop %v1814
      %v1998 = vmul.f32 %v1814, %v1997
      %v1999 = vsub.f32 1.0, %v1998
      %v2000 = vmul.f32 %v1997, %v1999
      %v2001 = vadd.f32 %v1997, %v2000
      %vm2002 = vweird.f32 %v1814
      %vm2003 = vweird.f32 %v1997
      %vm2004 = vmor %vm2002, %vm2003
      %v2005 = vsel %vm2004, %v1997, %v2001
      %v2006 = vand.u32 2147483647, %v1814
      %vm2007 = vcmp.eq.f32.partialorder %v2006, 8.507059e+37
      %v2008 = vand.u32 %v1814, 2147483648
      %v2009 = vor.u32 1.1754944e-38, %v2008
      %v2010 = vsel %vm2007, %v2009, %v2005
      %v2011 = vrcp.pop %v1816
      %v2012 = vmul.f32 %v1816, %v2011
      %v2013 = vsub.f32 1.0, %v2012
      %v2014 = vmul.f32 %v2011, %v2013
      %v2015 = vadd.f32 %v2011, %v2014
      %vm2016 = vweird.f32 %v1816
      %vm2017 = vweird.f32 %v2011
      %vm2018 = vmor %vm2016, %vm2017
      %v2019 = vsel %vm2018, %v2011, %v2015
      %v2020 = vand.u32 2147483647, %v1816
      %vm2021 = vcmp.eq.f32.partialorder %v2020, 8.507059e+37
      %v2022 = vand.u32 %v1816, 2147483648
      %v2023 = vor.u32 1.1754944e-38, %v2022
      %v2024 = vsel %vm2021, %v2023, %v2019
      %v2025 = vrcp.pop %v1818
      %v2026 = vmul.f32 %v1818, %v2025
      %v2027 = vsub.f32 1.0, %v2026
      %v2028 = vmul.f32 %v2025, %v2027
      %v2029 = vadd.f32 %v2025, %v2028
      %vm2030 = vweird.f32 %v1818
      %vm2031 = vweird.f32 %v2025
      %vm2032 = vmor %vm2030, %vm2031
      %v2033 = vsel %vm2032, %v2025, %v2029
      %v2034 = vand.u32 2147483647, %v1818
      %vm2035 = vcmp.eq.f32.partialorder %v2034, 8.507059e+37
      %v2036 = vand.u32 %v1818, 2147483648
      %v2037 = vor.u32 1.1754944e-38, %v2036
      %v2038 = vsel %vm2035, %v2037, %v2033
      %v2039 = vrcp.pop %v1820
      %v2040 = vmul.f32 %v1820, %v2039
      %v2041 = vsub.f32 1.0, %v2040
      %v2042 = vmul.f32 %v2039, %v2041
      %v2043 = vadd.f32 %v2039, %v2042
      %vm2044 = vweird.f32 %v1820
      %vm2045 = vweird.f32 %v2039
      %vm2046 = vmor %vm2044, %vm2045
      %v2047 = vsel %vm2046, %v2039, %v2043
      %v2048 = vand.u32 2147483647, %v1820
      %vm2049 = vcmp.eq.f32.partialorder %v2048, 8.507059e+37
      %v2050 = vand.u32 %v1820, 2147483648
      %v2051 = vor.u32 1.1754944e-38, %v2050
      %v2052 = vsel %vm2049, %v2051, %v2047
      %v2053 = vrcp.pop %v1822
      %v2054 = vmul.f32 %v1822, %v2053
      %v2055 = vsub.f32 1.0, %v2054
      %v2056 = vmul.f32 %v2053, %v2055
      %v2057 = vadd.f32 %v2053, %v2056
      %vm2058 = vweird.f32 %v1822
      %vm2059 = vweird.f32 %v2053
      %vm2060 = vmor %vm2058, %vm2059
      %v2061 = vsel %vm2060, %v2053, %v2057
      %v2062 = vand.u32 2147483647, %v1822
      %vm2063 = vcmp.eq.f32.partialorder %v2062, 8.507059e+37
      %v2064 = vand.u32 %v1822, 2147483648
      %v2065 = vor.u32 1.1754944e-38, %v2064
      %v2066 = vsel %vm2063, %v2065, %v2061
      %v2067 = vrcp.pop %v1824
      %v2068 = vmul.f32 %v1824, %v2067
      %v2069 = vsub.f32 1.0, %v2068
      %v2070 = vmul.f32 %v2067, %v2069
      %v2071 = vadd.f32 %v2067, %v2070
      %vm2072 = vweird.f32 %v1824
      %vm2073 = vweird.f32 %v2067
      %vm2074 = vmor %vm2072, %vm2073
      %v2075 = vsel %vm2074, %v2067, %v2071
      %v2076 = vand.u32 2147483647, %v1824
      %vm2077 = vcmp.eq.f32.partialorder %v2076, 8.507059e+37
      %v2078 = vand.u32 %v1824, 2147483648
      %v2079 = vor.u32 1.1754944e-38, %v2078
      %v2080 = vsel %vm2077, %v2079, %v2075
      %v2081 = vrcp.pop %v1826
      %v2082 = vmul.f32 %v1826, %v2081
      %v2083 = vsub.f32 1.0, %v2082
      %v2084 = vmul.f32 %v2081, %v2083
      %v2085 = vadd.f32 %v2081, %v2084
      %vm2086 = vweird.f32 %v1826
      %vm2087 = vweird.f32 %v2081
      %vm2088 = vmor %vm2086, %vm2087
      %v2089 = vsel %vm2088, %v2081, %v2085
      %v2090 = vand.u32 2147483647, %v1826
      %vm2091 = vcmp.eq.f32.partialorder %v2090, 8.507059e+37
      %v2092 = vand.u32 %v1826, 2147483648
      %v2093 = vor.u32 1.1754944e-38, %v2092
      %v2094 = vsel %vm2091, %v2093, %v2089
      %v2095 = vrcp.pop %v1828
      %v2096 = vmul.f32 %v1828, %v2095
      %v2097 = vsub.f32 1.0, %v2096
      %v2098 = vmul.f32 %v2095, %v2097
      %v2099 = vadd.f32 %v2095, %v2098
      %vm2100 = vweird.f32 %v1828
      %vm2101 = vweird.f32 %v2095
      %vm2102 = vmor %vm2100, %vm2101
      %v2103 = vsel %vm2102, %v2095, %v2099
      %v2104 = vand.u32 2147483647, %v1828
      %vm2105 = vcmp.eq.f32.partialorder %v2104, 8.507059e+37
      %v2106 = vand.u32 %v1828, 2147483648
      %v2107 = vor.u32 1.1754944e-38, %v2106
      %v2108 = vsel %vm2105, %v2107, %v2103
      %v2109 = vrcp.pop %v1830
      %v2110 = vmul.f32 %v1830, %v2109
      %v2111 = vsub.f32 1.0, %v2110
      %v2112 = vmul.f32 %v2109, %v2111
      %v2113 = vadd.f32 %v2109, %v2112
      %vm2114 = vweird.f32 %v1830
      %vm2115 = vweird.f32 %v2109
      %vm2116 = vmor %vm2114, %vm2115
      %v2117 = vsel %vm2116, %v2109, %v2113
      %v2118 = vand.u32 2147483647, %v1830
      %vm2119 = vcmp.eq.f32.partialorder %v2118, 8.507059e+37
      %v2120 = vand.u32 %v1830, 2147483648
      %v2121 = vor.u32 1.1754944e-38, %v2120
      %v2122 = vsel %vm2119, %v2121, %v2117
      %v2123 = vrcp.pop %v1832
      %v2124 = vmul.f32 %v1832, %v2123
      %v2125 = vsub.f32 1.0, %v2124
      %v2126 = vmul.f32 %v2123, %v2125
      %v2127 = vadd.f32 %v2123, %v2126
      %vm2128 = vweird.f32 %v1832
      %vm2129 = vweird.f32 %v2123
      %vm2130 = vmor %vm2128, %vm2129
      %v2131 = vsel %vm2130, %v2123, %v2127
      %v2132 = vand.u32 2147483647, %v1832
      %vm2133 = vcmp.eq.f32.partialorder %v2132, 8.507059e+37
      %v2134 = vand.u32 %v1832, 2147483648
      %v2135 = vor.u32 1.1754944e-38, %v2134
      %v2136 = vsel %vm2133, %v2135, %v2131
      %v2137 = vrcp.pop %v1834
      %v2138 = vmul.f32 %v1834, %v2137
      %v2139 = vsub.f32 1.0, %v2138
      %v2140 = vmul.f32 %v2137, %v2139
      %v2141 = vadd.f32 %v2137, %v2140
      %vm2142 = vweird.f32 %v1834
      %vm2143 = vweird.f32 %v2137
      %vm2144 = vmor %vm2142, %vm2143
      %v2145 = vsel %vm2144, %v2137, %v2141
      %v2146 = vand.u32 2147483647, %v1834
      %vm2147 = vcmp.eq.f32.partialorder %v2146, 8.507059e+37
      %v2148 = vand.u32 %v1834, 2147483648
      %v2149 = vor.u32 1.1754944e-38, %v2148
      %v2150 = vsel %vm2147, %v2149, %v2145
      %v2151 = vrcp.pop %v1836
      %v2152 = vmul.f32 %v1836, %v2151
      %v2153 = vsub.f32 1.0, %v2152
      %v2154 = vmul.f32 %v2151, %v2153
      %v2155 = vadd.f32 %v2151, %v2154
      %vm2156 = vweird.f32 %v1836
      %vm2157 = vweird.f32 %v2151
      %vm2158 = vmor %vm2156, %vm2157
      %v2159 = vsel %vm2158, %v2151, %v2155
      %v2160 = vand.u32 2147483647, %v1836
      %vm2161 = vcmp.eq.f32.partialorder %v2160, 8.507059e+37
      %v2162 = vand.u32 %v1836, 2147483648
      %v2163 = vor.u32 1.1754944e-38, %v2162
      %v2164 = vsel %vm2161, %v2163, %v2159
      %v2165 = vrcp.pop %v1838
      %v2166 = vmul.f32 %v1838, %v2165
      %v2167 = vsub.f32 1.0, %v2166
      %v2168 = vmul.f32 %v2165, %v2167
      %v2169 = vadd.f32 %v2165, %v2168
      %vm2170 = vweird.f32 %v1838
      %vm2171 = vweird.f32 %v2165
      %vm2172 = vmor %vm2170, %vm2171
      %v2173 = vsel %vm2172, %v2165, %v2169
      %v2174 = vand.u32 2147483647, %v1838
      %vm2175 = vcmp.eq.f32.partialorder %v2174, 8.507059e+37
      %v2176 = vand.u32 %v1838, 2147483648
      %v2177 = vor.u32 1.1754944e-38, %v2176
      %v2178 = vsel %vm2175, %v2177, %v2173
      %v2179 = vrcp.pop %v1840
      %v2180 = vmul.f32 %v1840, %v2179
      %v2181 = vsub.f32 1.0, %v2180
      %v2182 = vmul.f32 %v2179, %v2181
      %v2183 = vadd.f32 %v2179, %v2182
      %vm2184 = vweird.f32 %v1840
      %vm2185 = vweird.f32 %v2179
      %vm2186 = vmor %vm2184, %vm2185
      %v2187 = vsel %vm2186, %v2179, %v2183
      %v2188 = vand.u32 2147483647, %v1840
      %vm2189 = vcmp.eq.f32.partialorder %v2188, 8.507059e+37
      %v2190 = vand.u32 %v1840, 2147483648
      %v2191 = vor.u32 1.1754944e-38, %v2190
      %v2192 = vsel %vm2189, %v2191, %v2187
      %v2193 = vrcp.pop %v1842
      %v2194 = vmul.f32 %v1842, %v2193
      %v2195 = vsub.f32 1.0, %v2194
      %v2196 = vmul.f32 %v2193, %v2195
      %v2197 = vadd.f32 %v2193, %v2196
      %vm2198 = vweird.f32 %v1842
      %vm2199 = vweird.f32 %v2193
      %vm2200 = vmor %vm2198, %vm2199
      %v2201 = vsel %vm2200, %v2193, %v2197
      %v2202 = vand.u32 2147483647, %v1842
      %vm2203 = vcmp.eq.f32.partialorder %v2202, 8.507059e+37
      %v2204 = vand.u32 %v1842, 2147483648
      %v2205 = vor.u32 1.1754944e-38, %v2204
      %v2206 = vsel %vm2203, %v2205, %v2201
      %v2207 = vrcp.pop %v1844
      %v2208 = vmul.f32 %v1844, %v2207
      %v2209 = vsub.f32 1.0, %v2208
      %v2210 = vmul.f32 %v2207, %v2209
      %v2211 = vadd.f32 %v2207, %v2210
      %vm2212 = vweird.f32 %v1844
      %vm2213 = vweird.f32 %v2207
      %vm2214 = vmor %vm2212, %vm2213
      %v2215 = vsel %vm2214, %v2207, %v2211
      %v2216 = vand.u32 2147483647, %v1844
      %vm2217 = vcmp.eq.f32.partialorder %v2216, 8.507059e+37
      %v2218 = vand.u32 %v1844, 2147483648
      %v2219 = vor.u32 1.1754944e-38, %v2218
      %v2220 = vsel %vm2217, %v2219, %v2215
      %v2221 = vrcp.pop %v1846
      %v2222 = vmul.f32 %v1846, %v2221
      %v2223 = vsub.f32 1.0, %v2222
      %v2224 = vmul.f32 %v2221, %v2223
      %v2225 = vadd.f32 %v2221, %v2224
      %vm2226 = vweird.f32 %v1846
      %vm2227 = vweird.f32 %v2221
      %vm2228 = vmor %vm2226, %vm2227
      %v2229 = vsel %vm2228, %v2221, %v2225
      %v2230 = vand.u32 2147483647, %v1846
      %vm2231 = vcmp.eq.f32.partialorder %v2230, 8.507059e+37
      %v2232 = vand.u32 %v1846, 2147483648
      %v2233 = vor.u32 1.1754944e-38, %v2232
      %v2234 = vsel %vm2231, %v2233, %v2229
      %v2235 = vrcp.pop %v1848
      %v2236 = vmul.f32 %v1848, %v2235
      %v2237 = vsub.f32 1.0, %v2236
      %v2238 = vmul.f32 %v2235, %v2237
      %v2239 = vadd.f32 %v2235, %v2238
      %vm2240 = vweird.f32 %v1848
      %vm2241 = vweird.f32 %v2235
      %vm2242 = vmor %vm2240, %vm2241
      %v2243 = vsel %vm2242, %v2235, %v2239
      %v2244 = vand.u32 2147483647, %v1848
      %vm2245 = vcmp.eq.f32.partialorder %v2244, 8.507059e+37
      %v2246 = vand.u32 %v1848, 2147483648
      %v2247 = vor.u32 1.1754944e-38, %v2246
      %v2248 = vsel %vm2245, %v2247, %v2243
      %v2249 = vrcp.pop %v1850
      %v2250 = vmul.f32 %v1850, %v2249
      %v2251 = vsub.f32 1.0, %v2250
      %v2252 = vmul.f32 %v2249, %v2251
      %v2253 = vadd.f32 %v2249, %v2252
      %vm2254 = vweird.f32 %v1850
      %vm2255 = vweird.f32 %v2249
      %vm2256 = vmor %vm2254, %vm2255
      %v2257 = vsel %vm2256, %v2249, %v2253
      %v2258 = vand.u32 2147483647, %v1850
      %vm2259 = vcmp.eq.f32.partialorder %v2258, 8.507059e+37
      %v2260 = vand.u32 %v1850, 2147483648
      %v2261 = vor.u32 1.1754944e-38, %v2260
      %v2262 = vsel %vm2259, %v2261, %v2257
      %v2263 = vrcp.pop %v1852
      %v2264 = vmul.f32 %v1852, %v2263
      %v2265 = vsub.f32 1.0, %v2264
      %v2266 = vmul.f32 %v2263, %v2265
      %v2267 = vadd.f32 %v2263, %v2266
      %vm2268 = vweird.f32 %v1852
      %vm2269 = vweird.f32 %v2263
      %vm2270 = vmor %vm2268, %vm2269
      %v2271 = vsel %vm2270, %v2263, %v2267
      %v2272 = vand.u32 2147483647, %v1852
      %vm2273 = vcmp.eq.f32.partialorder %v2272, 8.507059e+37
      %v2274 = vand.u32 %v1852, 2147483648
      %v2275 = vor.u32 1.1754944e-38, %v2274
      %v2276 = vsel %vm2273, %v2275, %v2271
      %v2277 = vrcp.pop %v1854
      %v2278 = vmul.f32 %v1854, %v2277
      %v2279 = vsub.f32 1.0, %v2278
      %v2280 = vmul.f32 %v2277, %v2279
      %v2281 = vadd.f32 %v2277, %v2280
      %vm2282 = vweird.f32 %v1854
      %vm2283 = vweird.f32 %v2277
      %vm2284 = vmor %vm2282, %vm2283
      %v2285 = vsel %vm2284, %v2277, %v2281
      %v2286 = vand.u32 2147483647, %v1854
      %vm2287 = vcmp.eq.f32.partialorder %v2286, 8.507059e+37
      %v2288 = vand.u32 %v1854, 2147483648
      %v2289 = vor.u32 1.1754944e-38, %v2288
      %v2290 = vsel %vm2287, %v2289, %v2285
      %v2291 = vrcp.pop %v1856
      %v2292 = vmul.f32 %v1856, %v2291
      %v2293 = vsub.f32 1.0, %v2292
      %v2294 = vmul.f32 %v2291, %v2293
      %v2295 = vadd.f32 %v2291, %v2294
      %vm2296 = vweird.f32 %v1856
      %vm2297 = vweird.f32 %v2291
      %vm2298 = vmor %vm2296, %vm2297
      %v2299 = vsel %vm2298, %v2291, %v2295
      %v2300 = vand.u32 2147483647, %v1856
      %vm2301 = vcmp.eq.f32.partialorder %v2300, 8.507059e+37
      %v2302 = vand.u32 %v1856, 2147483648
      %v2303 = vor.u32 1.1754944e-38, %v2302
      %v2304 = vsel %vm2301, %v2303, %v2299
      %v2305 = vmul.f32 %v1730, %v1870
      %v2306 = vmul.f32 %v1732, %v1884
      %v2307 = vmul.f32 %v1734, %v1898
      %v2308 = vmul.f32 %v1736, %v1912
      %v2309 = vmul.f32 %v1738, %v1926
      %v2310 = vmul.f32 %v1740, %v1940
      %v2311 = vmul.f32 %v1742, %v1954
      %v2312 = vmul.f32 %v1744, %v1968
      %v2313 = vmul.f32 %v1746, %v1982
      %v2314 = vmul.f32 %v1748, %v1996
      %v2315 = vmul.f32 %v1750, %v2010
      %v2316 = vmul.f32 %v1752, %v2024
      %v2317 = vmul.f32 %v1754, %v2038
      %v2318 = vmul.f32 %v1756, %v2052
      %v2319 = vmul.f32 %v1758, %v2066
      %v2320 = vmul.f32 %v1760, %v2080
      %v2321 = vmul.f32 %v1762, %v2094
      %v2322 = vmul.f32 %v1764, %v2108
      %v2323 = vmul.f32 %v1766, %v2122
      %v2324 = vmul.f32 %v1768, %v2136
      %v2325 = vmul.f32 %v1770, %v2150
      %v2326 = vmul.f32 %v1772, %v2164
      %v2327 = vmul.f32 %v1774, %v2178
      %v2328 = vmul.f32 %v1776, %v2192
      %v2329 = vmul.f32 %v1778, %v2206
      %v2330 = vmul.f32 %v1780, %v2220
      %v2331 = vmul.f32 %v1782, %v2234
      %v2332 = vmul.f32 %v1784, %v2248
      %v2333 = vmul.f32 %v1786, %v2262
      %v2334 = vmul.f32 %v1788, %v2276
      %v2335 = vmul.f32 %v1790, %v2290
      %v2336 = vmul.f32 %v1792, %v2304
      %2337 = vst [vmem:[%s280] sm:$0xff] %v2305
      %2338 = vst [vmem:[%s280 + $0x8] sm:$0xff] %v2306
      %2339 = vst [vmem:[%s280 + $0x10] sm:$0xff] %v2307
      %2340 = vst [vmem:[%s280 + $0x18] sm:$0xff] %v2308
      %2341 = vst [vmem:[%s280 + $0x20] sm:$0xff] %v2309
      %2342 = vst [vmem:[%s280 + $0x28] sm:$0xff] %v2310
      %2343 = vst [vmem:[%s280 + $0x30] sm:$0xff] %v2311
      %2344 = vst [vmem:[%s280 + $0x38] sm:$0xff] %v2312
      %2345 = vst [vmem:[%s280 + $0x40] sm:$0xff] %v2313
      %2346 = vst [vmem:[%s280 + $0x48] sm:$0xff] %v2314
      %2347 = vst [vmem:[%s280 + $0x50] sm:$0xff] %v2315
      %2348 = vst [vmem:[%s280 + $0x58] sm:$0xff] %v2316
      %2349 = vst [vmem:[%s280 + $0x60] sm:$0xff] %v2317
      %2350 = vst [vmem:[%s280 + $0x68] sm:$0xff] %v2318
      %2351 = vst [vmem:[%s280 + $0x70] sm:$0xff] %v2319
      %2352 = vst [vmem:[%s280 + $0x78] sm:$0xff] %v2320
      %2353 = vst [vmem:[%s280 + $0x80] sm:$0xff] %v2321
      %2354 = vst [vmem:[%s280 + $0x88] sm:$0xff] %v2322
      %2355 = vst [vmem:[%s280 + $0x90] sm:$0xff] %v2323
      %2356 = vst [vmem:[%s280 + $0x98] sm:$0xff] %v2324
      %2357 = vst [vmem:[%s280 + $0xa0] sm:$0xff] %v2325
      %2358 = vst [vmem:[%s280 + $0xa8] sm:$0xff] %v2326
      %2359 = vst [vmem:[%s280 + $0xb0] sm:$0xff] %v2327
      %2360 = vst [vmem:[%s280 + $0xb8] sm:$0xff] %v2328
      %2361 = vst [vmem:[%s280 + $0xc0] sm:$0xff] %v2329
      %2362 = vst [vmem:[%s280 + $0xc8] sm:$0xff] %v2330
      %2363 = vst [vmem:[%s280 + $0xd0] sm:$0xff] %v2331
      %2364 = vst [vmem:[%s280 + $0xd8] sm:$0xff] %v2332
      %2365 = vst [vmem:[%s280 + $0xe0] sm:$0xff] %v2333
      %2366 = vst [vmem:[%s280 + $0xe8] sm:$0xff] %v2334
      %2367 = vst [vmem:[%s280 + $0xf0] sm:$0xff] %v2335
      %2368 = vst [vmem:[%s280 + $0xf8] sm:$0xff] %v2336
      %s2369 = smul.u32 32, %s18
      %p2370 = scmp.lt.s32.totalorder %s2369, 63
      %s2371 = scalar_select %p2370, %s2369, 63
      %s2372 = smul.addr %s2371, 8
      %s2373 = scalar_lea.vmem %s7, %s2372
      // Predicated region
      $region49: #{actor_forward.1} parent=47 // pred_check
        %p2374 = pneg %p188
      $region50: #{actor_forward.1} parent=47 // pred_check_branch
        %2376 = sbr.rel (%p2374) target = $region52
      $region51: #{actor_forward.1} parent=47 // pred_region
        %s2377 = smul.u32 32, %s18
      $region52: #{actor_forward.1} parent=47 // pred_fallthru
        _
    $region48: #{actor_forward.1} parent=5 // pred_fallthru
      _
    %p2378 = scmp.le.s32.totalorder 2, %s13
    // Predicated region
    $region53: #{actor_forward.1} parent=5 // pred_check
      %p2379 = pneg %p2378
    $region54: #{actor_forward.1} parent=5 // pred_check_branch
      %2381 = sbr.rel (%p2379) target = $region56
    $region55: #{actor_forward.1} parent=5 // pred_region
      %s2382 = ssub.s32 %s13, 2
      // Predicated region
      $region57: #{actor_forward.1} parent=55 // pred_check
        %p2383 = pneg %p194
      $region58: #{actor_forward.1} parent=55 // pred_check_branch
        %2385 = sbr.rel (%p2383) target = $region60
      $region59: #{actor_forward.1} parent=55 // pred_region
        %s2386 = smul.u32 32, %s19
        %p2387 = scmp.lt.s32.totalorder %s2386, 63
        %s2388 = scalar_select %p2387, %s2386, 63
        %s2389 = smul.addr %s2388, 8
        %s2390 = scalar_lea.vmem %s7, %s2389
      $region60: #{actor_forward.1} parent=55 // pred_fallthru
        _
    $region56: #{actor_forward.1} parent=5 // pred_fallthru
      _
  $region6: #{actor_forward.1} parent=0 // loop_footer
    %s17 = sadd.s32 1, %s13
  $region7: #{actor_forward.1} parent=0 // loop_footer_branch
    %12 = sbr.rel target = $region3
  $region8: #{actor_forward.1} parent=0 // loop_exit
    _

</llo_original>
